<compile_context>
chip_gen: v7x
topology: tpu7x:2x2x1
jax: 0.10.0
libtpu: 0.0.40
codegen_flags: <defaults>
</compile_context>

<pallas_src>
import functools

import jax
import jax.numpy as jnp
from jax.experimental import pallas as pl
from jax.experimental.pallas import tpu as pltpu

COS_EPS = 1e-8  # nn.CosineSimilarity default eps


def _cosine_f32(a, b):
    # torch.nn.CosineSimilarity(dim=1, eps=1e-8):
    #   sim = a.b / max(||a|| * ||b||, eps)
    #       = a.b * rsqrt(max(||a||^2 * ||b||^2, eps^2))   (identical for x>=0)
    dot = jnp.sum(a * b, axis=-1, keepdims=True)
    n2 = (jnp.sum(a * a, axis=-1, keepdims=True) *
          jnp.sum(b * b, axis=-1, keepdims=True))
    return dot * jax.lax.rsqrt(jnp.maximum(n2, COS_EPS * COS_EPS))


def _cross_encoder_kernel(ep_dtype, xt_ref, xe_ref, wt_ref, bt_ref,
                          we_ref, be_ref, out_ref):
    """One batch tile: poolers (dense + tanh), cosine sims, mean of scores.

    xt_ref / xe_ref hold [q; p] and [qe; pe] stacked on the row axis, so each
    HxH weight is pushed through the MXU once per step for both operands.
    """
    tb = out_ref.shape[0]

    # x @ W^T without transposing W in HBM: contract the hidden axis of x with
    # the 'in' axis of the (out, in) nn.Linear weight.
    dn = (((1,), (1,)), ((), ()))
    ht = jax.lax.dot_general(xt_ref[...], wt_ref[...], dn,
                             preferred_element_type=jnp.float32)
    he = jax.lax.dot_general(xe_ref[...], we_ref[...], dn,
                             preferred_element_type=jnp.float32)

    # Pooler epilogue: bias add in f32, tanh in ep_dtype (bf16 EUP on v6e/v7x,
    # f32 on v5e), representations back to f32 for the cosine reductions.
    rt = jnp.tanh((ht + bt_ref[...]).astype(ep_dtype)).astype(jnp.float32)
    re = jnp.tanh((he + be_ref[...]).astype(ep_dtype)).astype(jnp.float32)

    q_rep, p_rep = rt[:tb], rt[tb:]
    qe_rep, pe_rep = re[:tb], re[tb:]

    # Names follow the reference source: "text_score" uses the entity reps.
    text_score = _cosine_f32(qe_rep, pe_rep)      # (TB, 1)
    entity_score = _cosine_f32(q_rep, p_rep)      # (TB, 1)

    # torch.mean(torch.stack([text_score, entity_score]), dim=0)
    out_ref[...] = 0.5 * (text_score + entity_score)


def prepare_params(w_text, b_text, w_ent, b_ent):
    """Cast the pooler parameters once (bf16 MXU weights, f32 biases)."""
    H = w_text.shape[0]
    return dict(
        w_text=jnp.asarray(w_text, jnp.bfloat16),   # (H, H), kept (out, in)
        w_ent=jnp.asarray(w_ent, jnp.bfloat16),
        b_text=jnp.asarray(b_text, jnp.float32).reshape(1, H),
        b_ent=jnp.asarray(b_ent, jnp.float32).reshape(1, H),
    )


def _default_epilogue_dtype():
    # bf16 VPU/EUP path exists on v6e/v7x; keep f32 on v5e and older chips.
    try:
        kind = jax.devices()[0].device_kind.lower()
    except Exception:
        return jnp.float32
    if any(tag in kind for tag in ("v2", "v3", "v4", "v5")):
        return jnp.float32
    return jnp.bfloat16


def fully_cross_encoder_forward(q_cls, p_cls, qe_cls, pe_cls, params,
                                *, block_b=512, epilogue_dtype=None):
    """q/p/qe/pe_cls: [B, H] CLS hidden states from the text / entity LMs.
    params: output of prepare_params().  Returns [B] scores."""
    B, H = q_cls.shape
    if epilogue_dtype is None:
        epilogue_dtype = _default_epilogue_dtype()

    # Batch tile: multiple of 16 (bf16 sublane packing), never larger than the
    # padded batch, and kept <= B_pad/2 when possible so v7x's two TensorCores
    # both receive grid steps via the "parallel" batch axis.
    block_b = max(16, (int(block_b) + 15) // 16 * 16)
    b16 = (B + 15) // 16 * 16
    if b16 >= 32:
        block_b = min(block_b, max(16, ((b16 // 2) + 15) // 16 * 16))
    else:
        block_b = min(block_b, b16)
    nb = pl.cdiv(B, block_b)
    B_pad = nb * block_b

    def prep_act(x):
        x = jnp.asarray(x, jnp.bfloat16)
        if B_pad != B:
            x = jnp.pad(x, ((0, B_pad - B), (0, 0)))
        return x.reshape(nb, block_b, H)

    q_b, p_b, qe_b, pe_b = map(prep_act, (q_cls, p_cls, qe_cls, pe_cls))
    # Stack the pairs sharing a pooler weight along the row axis: one
    # (2*TB, H) matmul per weight per step and no in-kernel concat copies.
    xt = jnp.concatenate([q_b, p_b], axis=1)     # (nb, 2*TB, H) bf16
    xe = jnp.concatenate([qe_b, pe_b], axis=1)   # (nb, 2*TB, H) bf16

    wt, we = params["w_text"], params["w_ent"]
    bt, be = params["b_text"], params["b_ent"]

    # Explicit VMEM budget: weights (worst case double-buffered) + biases,
    # double-buffered activation streams, and the f32 epilogue temporaries.
    vmem_bytes = (2 * 2 * H * H * 2 + 2 * H * 4
                  + 2 * 2 * (2 * block_b) * H * 2
                  + 4 * (2 * block_b) * H * 4
                  + 2 * 1024 * 1024)
    vmem_bytes = int(min(max(vmem_bytes, 16 * 1024 * 1024), 64 * 1024 * 1024))

    cost = pl.CostEstimate(
        flops=2 * 4 * B_pad * H * H,
        transcendentals=4 * B_pad * H + 2 * B_pad,     # tanh + rsqrt
        bytes_accessed=(4 * B_pad * H * 2 + 2 * H * H * 2
                        + 2 * H * 4 + B_pad * 4),
    )

    kernel = functools.partial(_cross_encoder_kernel, epilogue_dtype)

    def run(single_buffer_consts):
        const_kw = ({"pipeline_mode": pl.Buffered(1)}
                    if single_buffer_consts else {})
        x_spec = pl.BlockSpec((None, 2 * block_b, H), lambda i: (i, 0, 0))
        w_spec = pl.BlockSpec((H, H), lambda i: (0, 0), **const_kw)
        b_spec = pl.BlockSpec((1, H), lambda i: (0, 0), **const_kw)
        return pl.pallas_call(
            kernel,
            out_shape=jax.ShapeDtypeStruct((B_pad, 1), jnp.float32),
            grid=(nb,),
            in_specs=[x_spec, x_spec, w_spec, b_spec, w_spec, b_spec],
            out_specs=pl.BlockSpec((block_b, 1), lambda i: (i, 0)),
            compiler_params=pltpu.CompilerParams(
                dimension_semantics=("parallel",),
                vmem_limit_bytes=vmem_bytes),
            cost_estimate=cost,
        )(xt, xe, wt, bt, we, be)

    try:
        out = run(True)
    except Exception:
        # pipeline_mode=pl.Buffered(1) unsupported on this jax build: fall
        # back to default double-buffered constant blocks.
        out = run(False)

    return out[:B, 0]


def _reference_f32(q_cls, p_cls, qe_cls, pe_cls, w_text, b_text, w_ent, b_ent):
    """Pure-JAX f32 reference of the torch forward semantics."""
    def pooler(x, w, b):
        return jnp.tanh(x @ w.T + b)

    def cos(a, b):
        dot = jnp.sum(a * b, axis=1)
        return dot / jnp.maximum(
            jnp.linalg.norm(a, axis=1) * jnp.linalg.norm(b, axis=1), COS_EPS)

    q_rep = pooler(q_cls, w_text, b_text)
    p_rep = pooler(p_cls, w_text, b_text)
    qe_rep = pooler(qe_cls, w_ent, b_ent)
    pe_rep = pooler(pe_cls, w_ent, b_ent)
    text_score = cos(qe_rep, pe_rep)
    entity_score = cos(q_rep, p_rep)
    return jnp.mean(jnp.stack([text_score, entity_score]), axis=0)


def _reference_mixed(q_cls, p_cls, qe_cls, pe_cls, w_text, b_text, w_ent, b_ent):
    """bf16 MXU operands, f32 epilogue (close to the kernel's numerics)."""
    dn = (((1,), (1,)), ((), ()))

    def pooler(x, w, b):
        h = jax.lax.dot_general(x.astype(jnp.bfloat16), w.astype(jnp.bfloat16),
                                dn, preferred_element_type=jnp.float32)
        return jnp.tanh(h + b[None, :].astype(jnp.float32))

    def cos(a, b):
        dot = jnp.sum(a * b, axis=1)
        n2 = jnp.sum(a * a, axis=1) * jnp.sum(b * b, axis=1)
        return dot * jax.lax.rsqrt(jnp.maximum(n2, COS_EPS * COS_EPS))

    q_rep = pooler(q_cls, w_text, b_text)
    p_rep = pooler(p_cls, w_text, b_text)
    qe_rep = pooler(qe_cls, w_ent, b_ent)
    pe_rep = pooler(pe_cls, w_ent, b_ent)
    return 0.5 * (cos(qe_rep, pe_rep) + cos(q_rep, p_rep))


if __name__ == "__main__":
    B, S, H = 20, 8, 128  # small synthetic shapes (batch, seq, hidden)

    key = jax.random.PRNGKey(0)
    ks = jax.random.split(key, 8)

    # TODO(synk): the pretrained transformer encoders (AutoModel, LukeModel)
    # and their tokenizers are not translatable; their last_hidden_state is
    # synthesized here and only the CLS token feeds the poolers.
    q_hidden = jax.random.normal(ks[0], (B, S, H), jnp.float32)
    p_hidden = jax.random.normal(ks[1], (B, S, H), jnp.float32)
    qe_hidden = jax.random.normal(ks[2], (B, S, H), jnp.float32)
    pe_hidden = jax.random.normal(ks[3], (B, S, H), jnp.float32)
    q_cls, p_cls = q_hidden[:, 0, :], p_hidden[:, 0, :]
    qe_cls, pe_cls = qe_hidden[:, 0, :], pe_hidden[:, 0, :]

    # Deterministic pooler parameters (nn.Linear(H, H) per language model).
    w_text = jax.random.normal(ks[4], (H, H), jnp.float32) * 0.05
    b_text = jax.random.normal(ks[5], (H,), jnp.float32) * 0.05
    w_ent = jax.random.normal(ks[6], (H, H), jnp.float32) * 0.05
    b_ent = jax.random.normal(ks[7], (H,), jnp.float32) * 0.05

    params = prepare_params(w_text, b_text, w_ent, b_ent)  # bf16 cast once

    # B=20 -> block_b auto-caps to 16, grid=(2,): exercises the tiled path.
    out = fully_cross_encoder_forward(q_cls, p_cls, qe_cls, pe_cls, params)
    out = jax.block_until_ready(out)
    assert out.shape == (B,), out.shape

    ref_mixed = _reference_mixed(q_cls, p_cls, qe_cls, pe_cls,
                                 w_text, b_text, w_ent, b_ent)
    ref_f32 = _reference_f32(q_cls, p_cls, qe_cls, pe_cls,
                             w_text, b_text, w_ent, b_ent)
    assert jnp.allclose(out, ref_mixed, atol=2e-2, rtol=2e-2), (out, ref_mixed)
    assert jnp.allclose(out, ref_f32, atol=5e-2, rtol=5e-2), (out, ref_f32)
    print("KERNEL_OK")
</pallas_src>

<mosaic_0001>
module attributes {stable_mosaic.version = 11 : i64} {
  func.func @_cross_encoder_kernel(%arg0: i32, %arg1: memref<1x32x128xbf16, #tpu.memory_space<vmem>>, %arg2: memref<1x32x128xbf16, #tpu.memory_space<vmem>>, %arg3: memref<128x128xbf16, #tpu.memory_space<vmem>>, %arg4: memref<1x128xf32, #tpu.memory_space<vmem>>, %arg5: memref<128x128xbf16, #tpu.memory_space<vmem>>, %arg6: memref<1x128xf32, #tpu.memory_space<vmem>>, %arg7: memref<16x1xf32, #tpu.memory_space<vmem>>) attributes {dimension_semantics = [#tpu.dimension_semantics<parallel>], iteration_bounds = array<i64: 2>, scalar_prefetch = 0 : i64, scratch_operands = 0 : i64, tpu.core_type = #tpu.core_type<tc>, window_params = [{transform_indices = @transform_0, window_bounds = array<i64: 1, 32, 128>}, {transform_indices = @transform_1, window_bounds = array<i64: 1, 32, 128>}, {pipeline_mode = #tpu.pipeline_mode<synchronous>, transform_indices = @transform_2, window_bounds = array<i64: 128, 128>}, {pipeline_mode = #tpu.pipeline_mode<synchronous>, transform_indices = @transform_3, window_bounds = array<i64: 1, 128>}, {pipeline_mode = #tpu.pipeline_mode<synchronous>, transform_indices = @transform_4, window_bounds = array<i64: 128, 128>}, {pipeline_mode = #tpu.pipeline_mode<synchronous>, transform_indices = @transform_5, window_bounds = array<i64: 1, 128>}, {transform_indices = @transform_6, window_bounds = array<i64: 16, 1>}]} {
    %c0 = arith.constant 0 : index
    %c0_0 = arith.constant 0 : index
    %c0_1 = arith.constant 0 : index
    %0 = vector.load %arg1[%c0, %c0_0, %c0_1] : memref<1x32x128xbf16, #tpu.memory_space<vmem>>, vector<1x32x128xbf16>
    %1 = vector.shape_cast %0 : vector<1x32x128xbf16> to vector<32x128xbf16>
    %c0_2 = arith.constant 0 : index
    %c0_3 = arith.constant 0 : index
    %2 = vector.load %arg3[%c0_2, %c0_3] : memref<128x128xbf16, #tpu.memory_space<vmem>>, vector<128x128xbf16>
    %cst = arith.constant dense<0.000000e+00> : vector<32x128xf32>
    %3 = tpu.matmul %1, %2, %cst {dimension_numbers = #tpu.dot_dimension_numbers<[1], [1], [0], [0], [0, 0, 1, 0], [], []>} : vector<32x128xbf16>, vector<128x128xbf16>, vector<32x128xf32> -> vector<32x128xf32>
    %c0_4 = arith.constant 0 : index
    %c0_5 = arith.constant 0 : index
    %c0_6 = arith.constant 0 : index
    %4 = vector.load %arg2[%c0_4, %c0_5, %c0_6] : memref<1x32x128xbf16, #tpu.memory_space<vmem>>, vector<1x32x128xbf16>
    %5 = vector.shape_cast %4 : vector<1x32x128xbf16> to vector<32x128xbf16>
    %c0_7 = arith.constant 0 : index
    %c0_8 = arith.constant 0 : index
    %6 = vector.load %arg5[%c0_7, %c0_8] : memref<128x128xbf16, #tpu.memory_space<vmem>>, vector<128x128xbf16>
    %cst_9 = arith.constant dense<0.000000e+00> : vector<32x128xf32>
    %7 = tpu.matmul %5, %6, %cst_9 {dimension_numbers = #tpu.dot_dimension_numbers<[1], [1], [0], [0], [0, 0, 1, 0], [], []>} : vector<32x128xbf16>, vector<128x128xbf16>, vector<32x128xf32> -> vector<32x128xf32>
    %c0_10 = arith.constant 0 : index
    %c0_11 = arith.constant 0 : index
    %8 = vector.load %arg4[%c0_10, %c0_11] : memref<1x128xf32, #tpu.memory_space<vmem>>, vector<1x128xf32>
    %9 = vector.broadcast %8 : vector<1x128xf32> to vector<32x128xf32>
    %10 = arith.addf %3, %9 : vector<32x128xf32>
    %11 = arith.truncf %10 : vector<32x128xf32> to vector<32x128xbf16>
    %12 = math.tanh %11 : vector<32x128xbf16>
    %13 = arith.extf %12 : vector<32x128xbf16> to vector<32x128xf32>
    %c0_12 = arith.constant 0 : index
    %c0_13 = arith.constant 0 : index
    %14 = vector.load %arg6[%c0_12, %c0_13] : memref<1x128xf32, #tpu.memory_space<vmem>>, vector<1x128xf32>
    %15 = vector.broadcast %14 : vector<1x128xf32> to vector<32x128xf32>
    %16 = arith.addf %7, %15 : vector<32x128xf32>
    %17 = arith.truncf %16 : vector<32x128xf32> to vector<32x128xbf16>
    %18 = math.tanh %17 : vector<32x128xbf16>
    %19 = arith.extf %18 : vector<32x128xbf16> to vector<32x128xf32>
    %20 = vector.extract_strided_slice %13 {offsets = [0, 0], sizes = [16, 128], strides = [1, 1]} : vector<32x128xf32> to vector<16x128xf32>
    %21 = vector.extract_strided_slice %13 {offsets = [16, 0], sizes = [16, 128], strides = [1, 1]} : vector<32x128xf32> to vector<16x128xf32>
    %22 = vector.extract_strided_slice %19 {offsets = [0, 0], sizes = [16, 128], strides = [1, 1]} : vector<32x128xf32> to vector<16x128xf32>
    %23 = vector.extract_strided_slice %19 {offsets = [16, 0], sizes = [16, 128], strides = [1, 1]} : vector<32x128xf32> to vector<16x128xf32>
    %24 = arith.mulf %22, %23 : vector<16x128xf32>
    %cst_14 = arith.constant dense<0.000000e+00> : vector<16xf32>
    %25 = vector.multi_reduction <add>, %24, %cst_14 [1] : vector<16x128xf32> to vector<16xf32>
    %26 = vector.shape_cast %25 : vector<16xf32> to vector<16x1xf32>
    %27 = arith.mulf %22, %22 : vector<16x128xf32>
    %cst_15 = arith.constant dense<0.000000e+00> : vector<16xf32>
    %28 = vector.multi_reduction <add>, %27, %cst_15 [1] : vector<16x128xf32> to vector<16xf32>
    %29 = vector.shape_cast %28 : vector<16xf32> to vector<16x1xf32>
    %30 = arith.mulf %23, %23 : vector<16x128xf32>
    %cst_16 = arith.constant dense<0.000000e+00> : vector<16xf32>
    %31 = vector.multi_reduction <add>, %30, %cst_16 [1] : vector<16x128xf32> to vector<16xf32>
    %32 = vector.shape_cast %31 : vector<16xf32> to vector<16x1xf32>
    %33 = arith.mulf %29, %32 : vector<16x1xf32>
    %cst_17 = arith.constant 1.000000e-16 : f32
    %34 = vector.broadcast %cst_17 : f32 to vector<16x1xf32>
    %35 = arith.maximumf %33, %34 : vector<16x1xf32>
    %36 = math.rsqrt %35 : vector<16x1xf32>
    %37 = arith.mulf %26, %36 : vector<16x1xf32>
    %38 = arith.mulf %20, %21 : vector<16x128xf32>
    %cst_18 = arith.constant dense<0.000000e+00> : vector<16xf32>
    %39 = vector.multi_reduction <add>, %38, %cst_18 [1] : vector<16x128xf32> to vector<16xf32>
    %40 = vector.shape_cast %39 : vector<16xf32> to vector<16x1xf32>
    %41 = arith.mulf %20, %20 : vector<16x128xf32>
    %cst_19 = arith.constant dense<0.000000e+00> : vector<16xf32>
    %42 = vector.multi_reduction <add>, %41, %cst_19 [1] : vector<16x128xf32> to vector<16xf32>
    %43 = vector.shape_cast %42 : vector<16xf32> to vector<16x1xf32>
    %44 = arith.mulf %21, %21 : vector<16x128xf32>
    %cst_20 = arith.constant dense<0.000000e+00> : vector<16xf32>
    %45 = vector.multi_reduction <add>, %44, %cst_20 [1] : vector<16x128xf32> to vector<16xf32>
    %46 = vector.shape_cast %45 : vector<16xf32> to vector<16x1xf32>
    %47 = arith.mulf %43, %46 : vector<16x1xf32>
    %cst_21 = arith.constant 1.000000e-16 : f32
    %48 = vector.broadcast %cst_21 : f32 to vector<16x1xf32>
    %49 = arith.maximumf %47, %48 : vector<16x1xf32>
    %50 = math.rsqrt %49 : vector<16x1xf32>
    %51 = arith.mulf %40, %50 : vector<16x1xf32>
    %52 = arith.addf %37, %51 : vector<16x1xf32>
    %cst_22 = arith.constant 5.000000e-01 : f32
    %53 = vector.broadcast %cst_22 : f32 to vector<16x1xf32>
    %54 = arith.mulf %53, %52 : vector<16x1xf32>
    %c0_23 = arith.constant 0 : index
    %c0_24 = arith.constant 0 : index
    %55 = vector.load %arg7[%c0_23, %c0_24] : memref<16x1xf32, #tpu.memory_space<vmem>>, vector<16x1xf32>
    tpu.vector_store %arg7[%c0_23, %c0_24], %54 {strides = array<i32>} : memref<16x1xf32, #tpu.memory_space<vmem>>, vector<16x1xf32>,
    return
  }
  func.func @transform_0(%arg0: i32) -> (i32, i32, i32) {
    %c0_i32 = arith.constant 0 : i32
    %c0_i32_0 = arith.constant 0 : i32
    %c0_i32_1 = arith.constant 0 : i32
    return %arg0, %c0_i32, %c0_i32_0 : i32, i32, i32
  }
  func.func @transform_1(%arg0: i32) -> (i32, i32, i32) {
    %c0_i32 = arith.constant 0 : i32
    %c0_i32_0 = arith.constant 0 : i32
    %c0_i32_1 = arith.constant 0 : i32
    return %arg0, %c0_i32, %c0_i32_0 : i32, i32, i32
  }
  func.func @transform_2(%arg0: i32) -> (i32, i32) {
    %c0_i32 = arith.constant 0 : i32
    %c0_i32_0 = arith.constant 0 : i32
    %c0_i32_1 = arith.constant 0 : i32
    return %c0_i32, %c0_i32_0 : i32, i32
  }
  func.func @transform_3(%arg0: i32) -> (i32, i32) {
    %c0_i32 = arith.constant 0 : i32
    %c0_i32_0 = arith.constant 0 : i32
    %c0_i32_1 = arith.constant 0 : i32
    return %c0_i32, %c0_i32_0 : i32, i32
  }
  func.func @transform_4(%arg0: i32) -> (i32, i32) {
    %c0_i32 = arith.constant 0 : i32
    %c0_i32_0 = arith.constant 0 : i32
    %c0_i32_1 = arith.constant 0 : i32
    return %c0_i32, %c0_i32_0 : i32, i32
  }
  func.func @transform_5(%arg0: i32) -> (i32, i32) {
    %c0_i32 = arith.constant 0 : i32
    %c0_i32_0 = arith.constant 0 : i32
    %c0_i32_1 = arith.constant 0 : i32
    return %c0_i32, %c0_i32_0 : i32, i32
  }
  func.func @transform_6(%arg0: i32) -> (i32, i32) {
    %c0_i32 = arith.constant 0 : i32
    %c0_i32_0 = arith.constant 0 : i32
    return %arg0, %c0_i32 : i32, i32
  }
}

module attributes {stable_mosaic.version = 11 : i64} {
  func.func @_cross_encoder_kernel(%arg0: i32, %arg1: memref<1x32x128xbf16, #tpu.memory_space<vmem>>, %arg2: memref<1x32x128xbf16, #tpu.memory_space<vmem>>, %arg3: memref<128x128xbf16, #tpu.memory_space<vmem>>, %arg4: memref<1x128xf32, #tpu.memory_space<vmem>>, %arg5: memref<128x128xbf16, #tpu.memory_space<vmem>>, %arg6: memref<1x128xf32, #tpu.memory_space<vmem>>, %arg7: memref<16x1xf32, #tpu.memory_space<vmem>>) attributes {dimension_semantics = [#tpu.dimension_semantics<parallel>], iteration_bounds = array<i64: 2>, scalar_prefetch = 0 : i64, scratch_operands = 0 : i64, tpu.core_type = #tpu.core_type<tc>, window_params = [{transform_indices = @transform_0, window_bounds = array<i64: 1, 32, 128>}, {transform_indices = @transform_1, window_bounds = array<i64: 1, 32, 128>}, {pipeline_mode = #tpu.pipeline_mode<synchronous>, transform_indices = @transform_2, window_bounds = array<i64: 128, 128>}, {pipeline_mode = #tpu.pipeline_mode<synchronous>, transform_indices = @transform_3, window_bounds = array<i64: 1, 128>}, {pipeline_mode = #tpu.pipeline_mode<synchronous>, transform_indices = @transform_4, window_bounds = array<i64: 128, 128>}, {pipeline_mode = #tpu.pipeline_mode<synchronous>, transform_indices = @transform_5, window_bounds = array<i64: 1, 128>}, {transform_indices = @transform_6, window_bounds = array<i64: 16, 1>}]} {
    %c0 = arith.constant 0 : index
    %c0_0 = arith.constant 0 : index
    %c0_1 = arith.constant 0 : index
    %0 = vector.load %arg1[%c0, %c0_0, %c0_1] : memref<1x32x128xbf16, #tpu.memory_space<vmem>>, vector<1x32x128xbf16>
    %1 = vector.shape_cast %0 : vector<1x32x128xbf16> to vector<32x128xbf16>
    %c0_2 = arith.constant 0 : index
    %c0_3 = arith.constant 0 : index
    %2 = vector.load %arg3[%c0_2, %c0_3] : memref<128x128xbf16, #tpu.memory_space<vmem>>, vector<128x128xbf16>
    %cst = arith.constant dense<0.000000e+00> : vector<32x128xf32>
    %3 = tpu.matmul %1, %2, %cst {dimension_numbers = #tpu.dot_dimension_numbers<[1], [1], [0], [0], [0, 0, 1, 0], [], []>} : vector<32x128xbf16>, vector<128x128xbf16>, vector<32x128xf32> -> vector<32x128xf32>
    %c0_4 = arith.constant 0 : index
    %c0_5 = arith.constant 0 : index
    %c0_6 = arith.constant 0 : index
    %4 = vector.load %arg2[%c0_4, %c0_5, %c0_6] : memref<1x32x128xbf16, #tpu.memory_space<vmem>>, vector<1x32x128xbf16>
    %5 = vector.shape_cast %4 : vector<1x32x128xbf16> to vector<32x128xbf16>
    %c0_7 = arith.constant 0 : index
    %c0_8 = arith.constant 0 : index
    %6 = vector.load %arg5[%c0_7, %c0_8] : memref<128x128xbf16, #tpu.memory_space<vmem>>, vector<128x128xbf16>
    %cst_9 = arith.constant dense<0.000000e+00> : vector<32x128xf32>
    %7 = tpu.matmul %5, %6, %cst_9 {dimension_numbers = #tpu.dot_dimension_numbers<[1], [1], [0], [0], [0, 0, 1, 0], [], []>} : vector<32x128xbf16>, vector<128x128xbf16>, vector<32x128xf32> -> vector<32x128xf32>
    %c0_10 = arith.constant 0 : index
    %c0_11 = arith.constant 0 : index
    %8 = vector.load %arg4[%c0_10, %c0_11] : memref<1x128xf32, #tpu.memory_space<vmem>>, vector<1x128xf32>
    %9 = vector.broadcast %8 : vector<1x128xf32> to vector<32x128xf32>
    %10 = arith.addf %3, %9 : vector<32x128xf32>
    %11 = arith.truncf %10 : vector<32x128xf32> to vector<32x128xbf16>
    %12 = math.tanh %11 : vector<32x128xbf16>
    %13 = arith.extf %12 : vector<32x128xbf16> to vector<32x128xf32>
    %c0_12 = arith.constant 0 : index
    %c0_13 = arith.constant 0 : index
    %14 = vector.load %arg6[%c0_12, %c0_13] : memref<1x128xf32, #tpu.memory_space<vmem>>, vector<1x128xf32>
    %15 = vector.broadcast %14 : vector<1x128xf32> to vector<32x128xf32>
    %16 = arith.addf %7, %15 : vector<32x128xf32>
    %17 = arith.truncf %16 : vector<32x128xf32> to vector<32x128xbf16>
    %18 = math.tanh %17 : vector<32x128xbf16>
    %19 = arith.extf %18 : vector<32x128xbf16> to vector<32x128xf32>
    %20 = vector.extract_strided_slice %13 {offsets = [0, 0], sizes = [16, 128], strides = [1, 1]} : vector<32x128xf32> to vector<16x128xf32>
    %21 = vector.extract_strided_slice %13 {offsets = [16, 0], sizes = [16, 128], strides = [1, 1]} : vector<32x128xf32> to vector<16x128xf32>
    %22 = vector.extract_strided_slice %19 {offsets = [0, 0], sizes = [16, 128], strides = [1, 1]} : vector<32x128xf32> to vector<16x128xf32>
    %23 = vector.extract_strided_slice %19 {offsets = [16, 0], sizes = [16, 128], strides = [1, 1]} : vector<32x128xf32> to vector<16x128xf32>
    %24 = arith.mulf %22, %23 : vector<16x128xf32>
    %cst_14 = arith.constant dense<0.000000e+00> : vector<16xf32>
    %25 = vector.multi_reduction <add>, %24, %cst_14 [1] : vector<16x128xf32> to vector<16xf32>
    %26 = vector.shape_cast %25 : vector<16xf32> to vector<16x1xf32>
    %27 = arith.mulf %22, %22 : vector<16x128xf32>
    %cst_15 = arith.constant dense<0.000000e+00> : vector<16xf32>
    %28 = vector.multi_reduction <add>, %27, %cst_15 [1] : vector<16x128xf32> to vector<16xf32>
    %29 = vector.shape_cast %28 : vector<16xf32> to vector<16x1xf32>
    %30 = arith.mulf %23, %23 : vector<16x128xf32>
    %cst_16 = arith.constant dense<0.000000e+00> : vector<16xf32>
    %31 = vector.multi_reduction <add>, %30, %cst_16 [1] : vector<16x128xf32> to vector<16xf32>
    %32 = vector.shape_cast %31 : vector<16xf32> to vector<16x1xf32>
    %33 = arith.mulf %29, %32 : vector<16x1xf32>
    %cst_17 = arith.constant 1.000000e-16 : f32
    %34 = vector.broadcast %cst_17 : f32 to vector<16x1xf32>
    %35 = arith.maximumf %33, %34 : vector<16x1xf32>
    %36 = math.rsqrt %35 : vector<16x1xf32>
    %37 = arith.mulf %26, %36 : vector<16x1xf32>
    %38 = arith.mulf %20, %21 : vector<16x128xf32>
    %cst_18 = arith.constant dense<0.000000e+00> : vector<16xf32>
    %39 = vector.multi_reduction <add>, %38, %cst_18 [1] : vector<16x128xf32> to vector<16xf32>
    %40 = vector.shape_cast %39 : vector<16xf32> to vector<16x1xf32>
    %41 = arith.mulf %20, %20 : vector<16x128xf32>
    %cst_19 = arith.constant dense<0.000000e+00> : vector<16xf32>
    %42 = vector.multi_reduction <add>, %41, %cst_19 [1] : vector<16x128xf32> to vector<16xf32>
    %43 = vector.shape_cast %42 : vector<16xf32> to vector<16x1xf32>
    %44 = arith.mulf %21, %21 : vector<16x128xf32>
    %cst_20 = arith.constant dense<0.000000e+00> : vector<16xf32>
    %45 = vector.multi_reduction <add>, %44, %cst_20 [1] : vector<16x128xf32> to vector<16xf32>
    %46 = vector.shape_cast %45 : vector<16xf32> to vector<16x1xf32>
    %47 = arith.mulf %43, %46 : vector<16x1xf32>
    %cst_21 = arith.constant 1.000000e-16 : f32
    %48 = vector.broadcast %cst_21 : f32 to vector<16x1xf32>
    %49 = arith.maximumf %47, %48 : vector<16x1xf32>
    %50 = math.rsqrt %49 : vector<16x1xf32>
    %51 = arith.mulf %40, %50 : vector<16x1xf32>
    %52 = arith.addf %37, %51 : vector<16x1xf32>
    %cst_22 = arith.constant 5.000000e-01 : f32
    %53 = vector.broadcast %cst_22 : f32 to vector<16x1xf32>
    %54 = arith.mulf %53, %52 : vector<16x1xf32>
    %c0_23 = arith.constant 0 : index
    %c0_24 = arith.constant 0 : index
    %55 = vector.load %arg7[%c0_23, %c0_24] : memref<16x1xf32, #tpu.memory_space<vmem>>, vector<16x1xf32>
    tpu.vector_store %arg7[%c0_23, %c0_24], %54 {strides = array<i32>} : memref<16x1xf32, #tpu.memory_space<vmem>>, vector<16x1xf32>,
    return
  }
  func.func @transform_0(%arg0: i32) -> (i32, i32, i32) {
    %c0_i32 = arith.constant 0 : i32
    %c0_i32_0 = arith.constant 0 : i32
    %c0_i32_1 = arith.constant 0 : i32
    return %arg0, %c0_i32, %c0_i32_0 : i32, i32, i32
  }
  func.func @transform_1(%arg0: i32) -> (i32, i32, i32) {
    %c0_i32 = arith.constant 0 : i32
    %c0_i32_0 = arith.constant 0 : i32
    %c0_i32_1 = arith.constant 0 : i32
    return %arg0, %c0_i32, %c0_i32_0 : i32, i32, i32
  }
  func.func @transform_2(%arg0: i32) -> (i32, i32) {
    %c0_i32 = arith.constant 0 : i32
    %c0_i32_0 = arith.constant 0 : i32
    %c0_i32_1 = arith.constant 0 : i32
    return %c0_i32, %c0_i32_0 : i32, i32
  }
  func.func @transform_3(%arg0: i32) -> (i32, i32) {
    %c0_i32 = arith.constant 0 : i32
    %c0_i32_0 = arith.constant 0 : i32
    %c0_i32_1 = arith.constant 0 : i32
    return %c0_i32, %c0_i32_0 : i32, i32
  }
  func.func @transform_4(%arg0: i32) -> (i32, i32) {
    %c0_i32 = arith.constant 0 : i32
    %c0_i32_0 = arith.constant 0 : i32
    %c0_i32_1 = arith.constant 0 : i32
    return %c0_i32, %c0_i32_0 : i32, i32
  }
  func.func @transform_5(%arg0: i32) -> (i32, i32) {
    %c0_i32 = arith.constant 0 : i32
    %c0_i32_0 = arith.constant 0 : i32
    %c0_i32_1 = arith.constant 0 : i32
    return %c0_i32, %c0_i32_0 : i32, i32
  }
  func.func @transform_6(%arg0: i32) -> (i32, i32) {
    %c0_i32 = arith.constant 0 : i32
    %c0_i32_0 = arith.constant 0 : i32
    return %arg0, %c0_i32 : i32, i32
  }
}

</mosaic_0001>

<llo_original>
// kernel: tpu_custom_call.1
$region0: #{tpu_custom_call.1}
  #allocation0 [shape = 'u32[]', space=smem, size = 0x4, offset = 0x4, fixed_abs, tag = 'smem constant byte address 0x4 - core index']
  #allocation1 [shape = 'u32[144,128]{1,0:T(1,128)}', space=vmem, size = 0x12000, scoped, tag = 'internal scratch']
  %s0 = inlined_call_operand.hbm [shape: bf16[2,32,128], index: 0, kind: input, shape index: {}]
  %s1 = inlined_call_operand.hbm [shape: bf16[2,32,128], index: 1, kind: input, shape index: {}]
  %s2 = inlined_call_operand.hbm [shape: bf16[128,128], index: 2, kind: input, shape index: {}]
  %s3 = inlined_call_operand.vmem [shape: f32[1,128], index: 3, kind: input, shape index: {}]
  %s4 = inlined_call_operand.hbm [shape: bf16[128,128], index: 4, kind: input, shape index: {}]
  %s5 = inlined_call_operand.vmem [shape: f32[1,128], index: 5, kind: input, shape index: {}]
  %s6 = inlined_call_operand.vmem [shape: f32[32,1], index: 6, kind: output, shape index: {}]
  %s7 = sld [smem:[#allocation0]]
  $region73: #{tpu_custom_call.1} parent=0
    _
  %s9 = ssub.s32 1, %s7
  %s10 = scalar_select 0, %s9, %s7
  $region1: #{tpu_custom_call.1} parent=0
    #allocation2 [shape = 'u8[16384]{0}', space=vmem, size = 0x4000, scoped, tag = 'input window, operand 0']
    #allocation3 [shape = 's32[2]{0}', space=sflag, size = 0x8, scoped, tag = 'scoped memory for tpu_custom_call.1']
    #allocation4 [shape = 'u8[16384]{0}', space=vmem, size = 0x4000, scoped, tag = 'input window, operand 1']
    #allocation5 [shape = 's32[2]{0}', space=sflag, size = 0x8, scoped, tag = 'scoped memory for tpu_custom_call.1']
    #allocation6 [shape = 'u8[32768]{0}', space=vmem, size = 0x8000, scoped, tag = 'input window, operand 2, single buffered']
    #allocation7 [shape = 'u8[32768]{0}', space=vmem, size = 0x8000, scoped, tag = 'input window, operand 4, single buffered']
    #allocation8 [shape = 's32[1]{0}', space=sflag, size = 0x4, scoped, tag = 'scoped memory for tpu_custom_call.1']
    %11 = vsyncpa [#allocation3], 0
    %s12 = scalar_lea.sflag [#allocation3], 1
    %13 = vsyncpa %s12, 0
    %14 = vsyncpa [#allocation5], 0
    %s15 = scalar_lea.sflag [#allocation5], 1
    %16 = vsyncpa %s15, 0
    %17 = vsyncpa [#allocation8], 0
    loop: start=0, step=1, limit=4
    $region2: #{tpu_custom_call.1} parent=1 // loop_pre_header
      _
    $region3: #{tpu_custom_call.1} parent=1 // loop_header
      %s19 = sphi 0, %s23
      %p20 = scmp.ge.s32.totalorder %s19, 4
      %s29 = sphi 0, %s31
      %s32 = sphi 0, %s29
      %s33 = sphi 0, %s32
      %s49 = sphi 0, %s33
      %s55 = sphi 0, %s57
      %s58 = sphi 0, %s55
      %s59 = sphi 0, %s58
      %s75 = sphi 0, %s59
      %s79 = sphi 0, %s79
      %s81 = sphi 0, %s79
      %s82 = sphi 0, %s81
      %s96 = sphi 0, %s82
      %s100 = sphi 0, %s100
      %s102 = sphi 0, %s100
      %s103 = sphi 0, %s102
      %s117 = sphi 0, %s103
      %s121 = sphi 0, %s121
      %s123 = sphi 0, %s121
      %s124 = sphi 0, %s123
      %s138 = sphi 0, %s124
      %s142 = sphi 0, %s142
      %s144 = sphi 0, %s142
      %s145 = sphi 0, %s144
      %s159 = sphi 0, %s145
      %s165 = sphi 0, %s167
      %s168 = sphi 0, %s165
      %s169 = sphi 0, %s168
      %s185 = sphi 0, %s169
    $region4: #{tpu_custom_call.1} parent=1 // loop_header_branch
      %22 = sbr.rel (%p20) target = $region8
    $region5: #{tpu_custom_call.1} parent=1 // loop_body
      %s24 = ssub.s32 %s19, 1
      %s25 = ssub.s32 %s19, 2
      %s26 = sadd.s32 %s19, 1
      %s27 = ssub.s32 %s19, %s26
      %p28 = scmp.eq.s32.totalorder %s27, 0
      %s30 = sadd.s32 %s29, 1
      %s31 = scalar_select %p28, %s29, %s30
      %p34 = pneg %p28
      %p35 = scmp.eq.s32.totalorder %s19, 1
      %p36 = por %p34, %p35
      %p37 = scmp.ne.s32.totalorder %s29, %s32
      %p38 = scmp.eq.s32.totalorder %s19, 0
      %p39 = por %p37, %p38
      %p40 = scmp.ne.s32.totalorder %s29, %s32
      %p41 = scmp.eq.s32.totalorder %s24, 1
      %p42 = por %p40, %p41
      %p43 = scmp.ne.s32.totalorder %s32, %s33
      %p44 = scmp.eq.s32.totalorder %s24, 0
      %p45 = por %p43, %p44
      %p46 = scmp.ne.s32.totalorder %s32, %s33
      %p47 = scmp.eq.s32.totalorder %s25, 1
      %p48 = por %p46, %p47
      %p50 = scmp.ne.s32.totalorder %s33, %s49
      %p51 = scmp.eq.s32.totalorder %s25, 0
      %p52 = por %p50, %p51
      %s53 = ssub.s32 %s19, %s26
      %p54 = scmp.eq.s32.totalorder %s53, 0
      %s56 = sadd.s32 %s55, 1
      %s57 = scalar_select %p54, %s55, %s56
      %p60 = pneg %p54
      %p61 = scmp.eq.s32.totalorder %s19, 1
      %p62 = por %p60, %p61
      %p63 = scmp.ne.s32.totalorder %s55, %s58
      %p64 = scmp.eq.s32.totalorder %s19, 0
      %p65 = por %p63, %p64
      %p66 = scmp.ne.s32.totalorder %s55, %s58
      %p67 = scmp.eq.s32.totalorder %s24, 1
      %p68 = por %p66, %p67
      %p69 = scmp.ne.s32.totalorder %s58, %s59
      %p70 = scmp.eq.s32.totalorder %s24, 0
      %p71 = por %p69, %p70
      %p72 = scmp.ne.s32.totalorder %s58, %s59
      %p73 = scmp.eq.s32.totalorder %s25, 1
      %p74 = por %p72, %p73
      %p76 = scmp.ne.s32.totalorder %s59, %s75
      %p77 = scmp.eq.s32.totalorder %s25, 0
      %p78 = por %p76, %p77
      %s80 = sadd.s32 %s79, 1
      %p83 = scmp.eq.s32.totalorder %s19, 1
      %p84 = scmp.ne.s32.totalorder %s79, %s81
      %p85 = scmp.eq.s32.totalorder %s19, 0
      %p86 = por %p84, %p85
      %p87 = scmp.ne.s32.totalorder %s79, %s81
      %p88 = scmp.eq.s32.totalorder %s24, 1
      %p89 = por %p87, %p88
      %p90 = scmp.ne.s32.totalorder %s81, %s82
      %p91 = scmp.eq.s32.totalorder %s24, 0
      %p92 = por %p90, %p91
      %p93 = scmp.ne.s32.totalorder %s81, %s82
      %p94 = scmp.eq.s32.totalorder %s25, 1
      %p95 = por %p93, %p94
      %p97 = scmp.ne.s32.totalorder %s82, %s96
      %p98 = scmp.eq.s32.totalorder %s25, 0
      %p99 = por %p97, %p98
      %s101 = sadd.s32 %s100, 1
      %p104 = scmp.eq.s32.totalorder %s19, 1
      %p105 = scmp.ne.s32.totalorder %s100, %s102
      %p106 = scmp.eq.s32.totalorder %s19, 0
      %p107 = por %p105, %p106
      %p108 = scmp.ne.s32.totalorder %s100, %s102
      %p109 = scmp.eq.s32.totalorder %s24, 1
      %p110 = por %p108, %p109
      %p111 = scmp.ne.s32.totalorder %s102, %s103
      %p112 = scmp.eq.s32.totalorder %s24, 0
      %p113 = por %p111, %p112
      %p114 = scmp.ne.s32.totalorder %s102, %s103
      %p115 = scmp.eq.s32.totalorder %s25, 1
      %p116 = por %p114, %p115
      %p118 = scmp.ne.s32.totalorder %s103, %s117
      %p119 = scmp.eq.s32.totalorder %s25, 0
      %p120 = por %p118, %p119
      %s122 = sadd.s32 %s121, 1
      %p125 = scmp.eq.s32.totalorder %s19, 1
      %p126 = scmp.ne.s32.totalorder %s121, %s123
      %p127 = scmp.eq.s32.totalorder %s19, 0
      %p128 = por %p126, %p127
      %p129 = scmp.ne.s32.totalorder %s121, %s123
      %p130 = scmp.eq.s32.totalorder %s24, 1
      %p131 = por %p129, %p130
      %p132 = scmp.ne.s32.totalorder %s123, %s124
      %p133 = scmp.eq.s32.totalorder %s24, 0
      %p134 = por %p132, %p133
      %p135 = scmp.ne.s32.totalorder %s123, %s124
      %p136 = scmp.eq.s32.totalorder %s25, 1
      %p137 = por %p135, %p136
      %p139 = scmp.ne.s32.totalorder %s124, %s138
      %p140 = scmp.eq.s32.totalorder %s25, 0
      %p141 = por %p139, %p140
      %s143 = sadd.s32 %s142, 1
      %p146 = scmp.eq.s32.totalorder %s19, 1
      %p147 = scmp.ne.s32.totalorder %s142, %s144
      %p148 = scmp.eq.s32.totalorder %s19, 0
      %p149 = por %p147, %p148
      %p150 = scmp.ne.s32.totalorder %s142, %s144
      %p151 = scmp.eq.s32.totalorder %s24, 1
      %p152 = por %p150, %p151
      %p153 = scmp.ne.s32.totalorder %s144, %s145
      %p154 = scmp.eq.s32.totalorder %s24, 0
      %p155 = por %p153, %p154
      %p156 = scmp.ne.s32.totalorder %s144, %s145
      %p157 = scmp.eq.s32.totalorder %s25, 1
      %p158 = por %p156, %p157
      %p160 = scmp.ne.s32.totalorder %s145, %s159
      %p161 = scmp.eq.s32.totalorder %s25, 0
      %p162 = por %p160, %p161
      %s163 = ssub.s32 %s19, %s26
      %p164 = scmp.eq.s32.totalorder %s163, 0
      %s166 = sadd.s32 %s165, 1
      %s167 = scalar_select %p164, %s165, %s166
      %p170 = pneg %p164
      %p171 = scmp.eq.s32.totalorder %s19, 1
      %p172 = por %p170, %p171
      %p173 = scmp.ne.s32.totalorder %s165, %s168
      %p174 = scmp.eq.s32.totalorder %s19, 0
      %p175 = por %p173, %p174
      %p176 = scmp.ne.s32.totalorder %s165, %s168
      %p177 = scmp.eq.s32.totalorder %s24, 1
      %p178 = por %p176, %p177
      %p179 = scmp.ne.s32.totalorder %s168, %s169
      %p180 = scmp.eq.s32.totalorder %s24, 0
      %p181 = por %p179, %p180
      %p182 = scmp.ne.s32.totalorder %s168, %s169
      %p183 = scmp.eq.s32.totalorder %s25, 1
      %p184 = por %p182, %p183
      %p186 = scmp.ne.s32.totalorder %s169, %s185
      %p187 = scmp.eq.s32.totalorder %s25, 0
      %p188 = por %p186, %p187
      %p189 = scmp.le.s32.totalorder 1, %s19
      %p190 = scmp.lt.s32.totalorder %s19, 3
      %p191 = pnand %p189, %p190
      %p192 = pneg %p191
      // Predicated region
      $region9: #{tpu_custom_call.1} parent=5 // pred_check
        _
      $region10: #{tpu_custom_call.1} parent=5 // pred_check_branch
        %194 = sbr.rel (%p191) target = $region12
      $region11: #{tpu_custom_call.1} parent=5 // pred_region
        %s195 = ssub.s32 %s19, 1
        // Predicated region
        $region13: #{tpu_custom_call.1} parent=11 // pred_check
          %p196 = pneg %p92
        $region14: #{tpu_custom_call.1} parent=11 // pred_check_branch
          %198 = sbr.rel (%p196) target = $region16
        $region15: #{tpu_custom_call.1} parent=11 // pred_region
          %s200 = ssub.s32 1024, 1024
          %201 = vsyncadd [#allocation5], %s200
          %s202 = sshll.u32 [#allocation6], 4
          %s203 = int_to_ptr.vmem [resolvable:$true] %s202
          %208 = dma.hbm_to_vmem [thread:$0]  %s2, 1024, %s203, [#allocation5], 64, 64, 4
        $region16: #{tpu_custom_call.1} parent=11 // pred_fallthru
          _
        // Predicated region
        $region17: #{tpu_custom_call.1} parent=11 // pred_check
          %p209 = pneg %p113
        $region18: #{tpu_custom_call.1} parent=11 // pred_check_branch
          %211 = sbr.rel (%p209) target = $region20
        $region19: #{tpu_custom_call.1} parent=11 // pred_region
          _
        $region20: #{tpu_custom_call.1} parent=11 // pred_fallthru
          _
        // Predicated region
        $region21: #{tpu_custom_call.1} parent=11 // pred_check
          %p212 = pneg %p134
        $region22: #{tpu_custom_call.1} parent=11 // pred_check_branch
          %214 = sbr.rel (%p212) target = $region24
        $region23: #{tpu_custom_call.1} parent=11 // pred_region
          %s216 = ssub.s32 1024, 1024
          %217 = vsyncadd [#allocation8], %s216
          %s218 = sshll.u32 [#allocation7], 4
          %s219 = int_to_ptr.vmem [resolvable:$true] %s218
          %224 = dma.hbm_to_vmem [thread:$0]  %s4, 1024, %s219, [#allocation8], 64, 64, 4
        $region24: #{tpu_custom_call.1} parent=11 // pred_fallthru
          _
        // Predicated region
        $region25: #{tpu_custom_call.1} parent=11 // pred_check
          %p225 = pneg %p155
        $region26: #{tpu_custom_call.1} parent=11 // pred_check_branch
          %227 = sbr.rel (%p225) target = $region28
        $region27: #{tpu_custom_call.1} parent=11 // pred_region
          _
        $region28: #{tpu_custom_call.1} parent=11 // pred_fallthru
          _
      $region12: #{tpu_custom_call.1} parent=5 // pred_fallthru
        _
      %p228 = scmp.lt.s32.totalorder %s19, 2
      // Predicated region
      $region29: #{tpu_custom_call.1} parent=5 // pred_check
        %p229 = pneg %p228
      $region30: #{tpu_custom_call.1} parent=5 // pred_check_branch
        %231 = sbr.rel (%p229) target = $region32
      $region31: #{tpu_custom_call.1} parent=5 // pred_region
        // Predicated region
        $region33: #{tpu_custom_call.1} parent=31 // pred_check
          %p232 = pneg %p39
        $region34: #{tpu_custom_call.1} parent=31 // pred_check_branch
          %234 = sbr.rel (%p232) target = $region36
        $region35: #{tpu_custom_call.1} parent=31 // pred_region
          %s235 = sand.u32 %s29, 1
          %s236 = scalar_lea.sflag [#allocation3], %s235
          %s237 = sand.u32 %s29, 1
          %s238 = smul.addr %s237, 16
          %s239 = scalar_lea.vmem [#allocation2], %s238
          %s241 = ssub.s32 256, 256
          %242 = vsyncadd %s236, %s241
          %s243 = smul.addr %s19, 4
          %s244 = smul.addr %s243, 64
          %s245 = scalar_lea.hbm %s0, %s244
          %s246 = sshll.u32 %s239, 4
          %s247 = int_to_ptr.vmem [resolvable:$true] %s246
          %252 = dma.hbm_to_vmem [thread:$0]  %s245, 256, %s247, %s236, 64, 64, 4
        $region36: #{tpu_custom_call.1} parent=31 // pred_fallthru
          _
        // Predicated region
        $region37: #{tpu_custom_call.1} parent=31 // pred_check
          %p253 = pneg %p65
        $region38: #{tpu_custom_call.1} parent=31 // pred_check_branch
          %255 = sbr.rel (%p253) target = $region40
        $region39: #{tpu_custom_call.1} parent=31 // pred_region
          %s256 = sand.u32 %s19, 1
          %s257 = scalar_lea.sflag [#allocation5], %s256
          %s258 = sand.u32 %s55, 1
          %s259 = smul.addr %s258, 16
          %s260 = scalar_lea.vmem [#allocation4], %s259
          %s262 = ssub.s32 256, 256
          %263 = vsyncadd %s257, %s262
          %s264 = smul.addr %s19, 4
          %s265 = smul.addr %s264, 64
          %s266 = scalar_lea.hbm %s1, %s265
          %s267 = sshll.u32 %s260, 4
          %s268 = int_to_ptr.vmem [resolvable:$true] %s267
          %273 = dma.hbm_to_vmem [thread:$0]  %s266, 256, %s268, %s257, 64, 64, 4
        $region40: #{tpu_custom_call.1} parent=31 // pred_fallthru
          _
      $region32: #{tpu_custom_call.1} parent=5 // pred_fallthru
        _
      %p274 = scmp.le.s32.totalorder 1, %s19
      %p275 = scmp.lt.s32.totalorder %s19, 3
      %p276 = pnand %p274, %p275
      %p277 = pneg %p276
      // Predicated region
      $region41: #{tpu_custom_call.1} parent=5 // pred_check
        _
      $region42: #{tpu_custom_call.1} parent=5 // pred_check_branch
        %279 = sbr.rel (%p276) target = $region44
      $region43: #{tpu_custom_call.1} parent=5 // pred_region
        %s280 = ssub.s32 %s19, 1
        %s281 = sand.u32 %s32, 1
        %s282 = scalar_lea.sflag [#allocation3], %s281
        %s283 = sand.u32 %s32, 1
        %s284 = smul.addr %s283, 16
        %s285 = scalar_lea.vmem [#allocation2], %s284
        // Predicated region
        $region45: #{tpu_custom_call.1} parent=43 // pred_check
          %p286 = pneg %p45
        $region46: #{tpu_custom_call.1} parent=43 // pred_check_branch
          %288 = sbr.rel (%p286) target = $region48
        $region47: #{tpu_custom_call.1} parent=43 // pred_region
          %289 = dma.done %s282, 256
        $region48: #{tpu_custom_call.1} parent=43 // pred_fallthru
          _
        %s290 = sand.u32 %s24, 1
        %s291 = scalar_lea.sflag [#allocation5], %s290
        %s292 = sand.u32 %s58, 1
        %s293 = smul.addr %s292, 16
        %s294 = scalar_lea.vmem [#allocation4], %s293
        // Predicated region
        $region49: #{tpu_custom_call.1} parent=43 // pred_check
          %p295 = pneg %p71
        $region50: #{tpu_custom_call.1} parent=43 // pred_check_branch
          %297 = sbr.rel (%p295) target = $region52
        $region51: #{tpu_custom_call.1} parent=43 // pred_region
          %298 = dma.done %s291, 256
        $region52: #{tpu_custom_call.1} parent=43 // pred_fallthru
          _
        // Predicated region
        $region53: #{tpu_custom_call.1} parent=43 // pred_check
          %p299 = pneg %p92
        $region54: #{tpu_custom_call.1} parent=43 // pred_check_branch
          %301 = sbr.rel (%p299) target = $region56
        $region55: #{tpu_custom_call.1} parent=43 // pred_region
          %302 = dma.done [#allocation5], 1024
        $region56: #{tpu_custom_call.1} parent=43 // pred_fallthru
          _
        // Predicated region
        $region57: #{tpu_custom_call.1} parent=43 // pred_check
          %p303 = pneg %p134
        $region58: #{tpu_custom_call.1} parent=43 // pred_check_branch
          %305 = sbr.rel (%p303) target = $region60
        $region59: #{tpu_custom_call.1} parent=43 // pred_region
          %306 = dma.done [#allocation8], 1024
        $region60: #{tpu_custom_call.1} parent=43 // pred_fallthru
          _
        %s307 = sand.u32 %s32, 1
        %s308 = scalar_lea.sflag [#allocation3], %s307
        %s309 = sand.u32 %s32, 1
        %s310 = smul.addr %s309, 16
        %s311 = scalar_lea.vmem [#allocation2], %s310
        %p312 = pneg %p45
        %p313 = pneg %p42
        %s314 = sand.u32 %s24, 1
        %s315 = scalar_lea.sflag [#allocation5], %s314
        %s316 = sand.u32 %s58, 1
        %s317 = smul.addr %s316, 16
        %s318 = scalar_lea.vmem [#allocation4], %s317
        %p319 = pneg %p71
        %p320 = pneg %p68
        %p321 = pneg %p92
        %p322 = pneg %p89
        %p323 = pneg %p113
        %p324 = pneg %p110
        %p325 = pneg %p134
        %p326 = pneg %p131
        %p327 = pneg %p155
        %p328 = pneg %p152
        %p329 = pneg %p181
        %p330 = pneg %p178
        %s331 = smul.u32 2, %s24
        %p332 = scmp.lt.s32.totalorder %s331, 3
        %s333 = scalar_select %p332, %s331, 3
        %s334 = smul.addr %s333, 8
        %s335 = scalar_lea.vmem %s6, %s334
        %s336 = smul.u32 2, %s24
        %p337 = scmp.lt.s32.totalorder %s336, 3
        %s338 = scalar_select %p337, %s336, 3
        %s339 = smul.addr %s338, 8
        %s340 = scalar_lea.vmem %s6, %s339
        %s341 = smul.u32 2, %s24
        %v343 = vld [vmem:[%s285] sm:$0xf]
        %v344 = vld [vmem:[%s285 + $0x4] sm:$0xf]
        %v345 = vld [vmem:[%s285 + $0x8] sm:$0xf]
        %v346 = vld [vmem:[%s285 + $0xc] sm:$0xf]
        %v347 = vld [vmem:[#allocation6] sm:$0xf]
        %v348 = vld [vmem:[#allocation6 + $0x4] sm:$0xf]
        %v349 = vld [vmem:[#allocation6 + $0x8] sm:$0xf]
        %v350 = vld [vmem:[#allocation6 + $0xc] sm:$0xf]
        %v351 = vld [vmem:[#allocation6 + $0x10] sm:$0xf]
        %v352 = vld [vmem:[#allocation6 + $0x14] sm:$0xf]
        %v353 = vld [vmem:[#allocation6 + $0x18] sm:$0xf]
        %v354 = vld [vmem:[#allocation6 + $0x1c] sm:$0xf]
        %v355 = vld [vmem:[#allocation6 + $0x20] sm:$0xf]
        %v356 = vld [vmem:[#allocation6 + $0x24] sm:$0xf]
        %v357 = vld [vmem:[#allocation6 + $0x28] sm:$0xf]
        %v358 = vld [vmem:[#allocation6 + $0x2c] sm:$0xf]
        %v359 = vld [vmem:[#allocation6 + $0x30] sm:$0xf]
        %v360 = vld [vmem:[#allocation6 + $0x34] sm:$0xf]
        %v361 = vld [vmem:[#allocation6 + $0x38] sm:$0xf]
        %v362 = vld [vmem:[#allocation6 + $0x3c] sm:$0xf]
        %v363 = vld [vmem:[%s294] sm:$0xf]
        %v364 = vld [vmem:[%s294 + $0x4] sm:$0xf]
        %v365 = vld [vmem:[%s294 + $0x8] sm:$0xf]
        %v366 = vld [vmem:[%s294 + $0xc] sm:$0xf]
        %v367 = vld [vmem:[#allocation7] sm:$0xf]
        %v368 = vld [vmem:[#allocation7 + $0x4] sm:$0xf]
        %v369 = vld [vmem:[#allocation7 + $0x8] sm:$0xf]
        %v370 = vld [vmem:[#allocation7 + $0xc] sm:$0xf]
        %v371 = vld [vmem:[#allocation7 + $0x10] sm:$0xf]
        %v372 = vld [vmem:[#allocation7 + $0x14] sm:$0xf]
        %v373 = vld [vmem:[#allocation7 + $0x18] sm:$0xf]
        %v374 = vld [vmem:[#allocation7 + $0x1c] sm:$0xf]
        %v375 = vld [vmem:[#allocation7 + $0x20] sm:$0xf]
        %v376 = vld [vmem:[#allocation7 + $0x24] sm:$0xf]
        %v377 = vld [vmem:[#allocation7 + $0x28] sm:$0xf]
        %v378 = vld [vmem:[#allocation7 + $0x2c] sm:$0xf]
        %v379 = vld [vmem:[#allocation7 + $0x30] sm:$0xf]
        %v380 = vld [vmem:[#allocation7 + $0x34] sm:$0xf]
        %v381 = vld [vmem:[#allocation7 + $0x38] sm:$0xf]
        %v382 = vld [vmem:[#allocation7 + $0x3c] sm:$0xf]
        %v383 = vld [vmem:[%s3] sm:$0x1]
        %v385 = vlaneseq
        %v386 = vshrl.u32 %v385, 7
        %v387 = vsub.s32 0, %v386
        %v388 = vrot.slane %v383, %v387
        %v394 = vunpack.c.l.b16 %v343
        %v395 = vunpack.c.l.b16 %v344
        %v396 = vunpack.c.l.b16 %v345
        %v397 = vunpack.c.l.b16 %v346
        %v398 = vpack.c.b16 %v395, %v394
        %v399 = vpack.c.b16 %v397, %v396
        %v418 = vunpack.c.l.b16 %v347
        %v419 = vunpack.c.l.b16 %v348
        %v420 = vunpack.c.l.b16 %v349
        %v421 = vunpack.c.l.b16 %v350
        %v422 = vunpack.c.l.b16 %v351
        %v423 = vunpack.c.l.b16 %v352
        %v424 = vunpack.c.l.b16 %v353
        %v425 = vunpack.c.l.b16 %v354
        %v426 = vunpack.c.l.b16 %v355
        %v427 = vunpack.c.l.b16 %v356
        %v428 = vunpack.c.l.b16 %v357
        %v429 = vunpack.c.l.b16 %v358
        %v430 = vunpack.c.l.b16 %v359
        %v431 = vunpack.c.l.b16 %v360
        %v432 = vunpack.c.l.b16 %v361
        %v433 = vunpack.c.l.b16 %v362
        %v434 = vpack.c.b16 %v419, %v418
        %v435 = vpack.c.b16 %v421, %v420
        %v436 = vpack.c.b16 %v423, %v422
        %v437 = vpack.c.b16 %v425, %v424
        %v438 = vpack.c.b16 %v427, %v426
        %v439 = vpack.c.b16 %v429, %v428
        %v440 = vpack.c.b16 %v431, %v430
        %v441 = vpack.c.b16 %v433, %v432
        %450 = vmatprep.subr.bf16.mxu0 0
        %451 = vmatpush1.bf16.xpose.msra.mxu0 %v434
        %452 = vmatprep.subr.bf16.mxu0 0
        %453 = vmatpush1.bf16.xpose.msra.mxu0 %v435
        %454 = vmatprep.subr.bf16.mxu0 0
        %455 = vmatpush1.bf16.xpose.msra.mxu0 %v436
        %456 = vmatprep.subr.bf16.mxu0 0
        %457 = vmatpush1.bf16.xpose.msra.mxu0 %v437
        %458 = vmatprep.subr.bf16.mxu0 0
        %459 = vmatpush1.bf16.xpose.msra.mxu0 %v438
        %460 = vmatprep.subr.bf16.mxu0 0
        %461 = vmatpush1.bf16.xpose.msra.mxu0 %v439
        %462 = vmatprep.subr.bf16.mxu0 0
        %463 = vmatpush1.bf16.xpose.msra.mxu0 %v440
        %464 = vmatprep.subr.bf16.mxu0 0
        %465 = vmatpush1.bf16.xpose.msra.mxu0 %v441
        %466 = vmatprep.subr.bf16.mxu0 0
        %467 = vmatpush1.bf16.xpose.msra.mxu0 0
        %468 = vmatprep.subr.bf16.mxu0 0
        %469 = vmatpush1.bf16.xpose.msra.mxu0 0
        %470 = vmatprep.subr.bf16.mxu0 0
        %471 = vmatpush1.bf16.xpose.msra.mxu0 0
        %472 = vmatprep.subr.bf16.mxu0 0
        %473 = vmatpush1.bf16.xpose.msra.mxu0 0
        %474 = vmatprep.subr.bf16.mxu0 0
        %475 = vmatpush1.bf16.xpose.msra.mxu0 0
        %476 = vmatprep.subr.bf16.mxu0 0
        %477 = vmatpush1.bf16.xpose.msra.mxu0 0
        %478 = vmatprep.subr.bf16.mxu0 0
        %479 = vmatpush1.bf16.xpose.msra.mxu0 0
        %480 = vmatprep.subr.bf16.mxu0 0
        %481 = vmatpush1.bf16.xpose.msra.mxu0 0
        %482 = vmatprep.mubr.bf16.mxu0 0
        %483 = vmatmul.mubr.bf16.gmra.mrb[0].mxu0 %v398
        %v484 = vpop.f32.mrb[0].mxu0
        %v485 = vadd.f32 %v388, %v484
        %v486 = vpop.f32.mrb[0].mxu0
        %v487 = vpop.f32.mrb[0].mxu0
        %v488 = vadd.f32 %v388, %v487
        %v489 = vpop.f32.mrb[0].mxu0
        %490 = vmatprep.mubr.bf16.mxu0 0
        %491 = vmatmul.mubr.bf16.gmra.mrb[0].mxu0 %v399
        %v492 = vpop.f32.mrb[0].mxu0
        %v493 = vadd.f32 %v388, %v492
        %v494 = vpop.f32.mrb[0].mxu0
        %v495 = vpop.f32.mrb[0].mxu0
        %v496 = vadd.f32 %v388, %v495
        %v497 = vpop.f32.mrb[0].mxu0
        %498 = vdwg.mxu0
        %v499 = vpack.c.bf16 %v488, %v485
        %v500 = vpack.c.bf16 %v496, %v493
        %v501 = vtanh.bf16.pop %v499
        %v502 = vtanh.bf16.pop %v500
        %v503 = vunpack.c.l.bf16 %v501
        %v504 = vunpack.c.h.bf16 %v501
        %v505 = vunpack.c.l.bf16 %v502
        %v506 = vunpack.c.h.bf16 %v502
        %v507 = vld [vmem:[%s5] sm:$0x1]
        %v509 = vlaneseq
        %v510 = vshrl.u32 %v509, 7
        %v511 = vsub.s32 0, %v510
        %v512 = vrot.slane %v507, %v511
        %v518 = vunpack.c.l.b16 %v363
        %v519 = vunpack.c.l.b16 %v364
        %v520 = vunpack.c.l.b16 %v365
        %v521 = vunpack.c.l.b16 %v366
        %v522 = vpack.c.b16 %v519, %v518
        %v523 = vpack.c.b16 %v521, %v520
        %v542 = vunpack.c.l.b16 %v367
        %v543 = vunpack.c.l.b16 %v368
        %v544 = vunpack.c.l.b16 %v369
        %v545 = vunpack.c.l.b16 %v370
        %v546 = vunpack.c.l.b16 %v371
        %v547 = vunpack.c.l.b16 %v372
        %v548 = vunpack.c.l.b16 %v373
        %v549 = vunpack.c.l.b16 %v374
        %v550 = vunpack.c.l.b16 %v375
        %v551 = vunpack.c.l.b16 %v376
        %v552 = vunpack.c.l.b16 %v377
        %v553 = vunpack.c.l.b16 %v378
        %v554 = vunpack.c.l.b16 %v379
        %v555 = vunpack.c.l.b16 %v380
        %v556 = vunpack.c.l.b16 %v381
        %v557 = vunpack.c.l.b16 %v382
        %v558 = vpack.c.b16 %v543, %v542
        %v559 = vpack.c.b16 %v545, %v544
        %v560 = vpack.c.b16 %v547, %v546
        %v561 = vpack.c.b16 %v549, %v548
        %v562 = vpack.c.b16 %v551, %v550
        %v563 = vpack.c.b16 %v553, %v552
        %v564 = vpack.c.b16 %v555, %v554
        %v565 = vpack.c.b16 %v557, %v556
        %574 = vmatprep.subr.bf16.mxu0 0
        %575 = vmatpush1.bf16.xpose.msra.mxu0 %v558
        %576 = vmatprep.subr.bf16.mxu0 0
        %577 = vmatpush1.bf16.xpose.msra.mxu0 %v559
        %578 = vmatprep.subr.bf16.mxu0 0
        %579 = vmatpush1.bf16.xpose.msra.mxu0 %v560
        %580 = vmatprep.subr.bf16.mxu0 0
        %581 = vmatpush1.bf16.xpose.msra.mxu0 %v561
        %582 = vmatprep.subr.bf16.mxu0 0
        %583 = vmatpush1.bf16.xpose.msra.mxu0 %v562
        %584 = vmatprep.subr.bf16.mxu0 0
        %585 = vmatpush1.bf16.xpose.msra.mxu0 %v563
        %586 = vmatprep.subr.bf16.mxu0 0
        %587 = vmatpush1.bf16.xpose.msra.mxu0 %v564
        %588 = vmatprep.subr.bf16.mxu0 0
        %589 = vmatpush1.bf16.xpose.msra.mxu0 %v565
        %590 = vmatprep.subr.bf16.mxu0 0
        %591 = vmatpush1.bf16.xpose.msra.mxu0 0
        %592 = vmatprep.subr.bf16.mxu0 0
        %593 = vmatpush1.bf16.xpose.msra.mxu0 0
        %594 = vmatprep.subr.bf16.mxu0 0
        %595 = vmatpush1.bf16.xpose.msra.mxu0 0
        %596 = vmatprep.subr.bf16.mxu0 0
        %597 = vmatpush1.bf16.xpose.msra.mxu0 0
        %598 = vmatprep.subr.bf16.mxu0 0
        %599 = vmatpush1.bf16.xpose.msra.mxu0 0
        %600 = vmatprep.subr.bf16.mxu0 0
        %601 = vmatpush1.bf16.xpose.msra.mxu0 0
        %602 = vmatprep.subr.bf16.mxu0 0
        %603 = vmatpush1.bf16.xpose.msra.mxu0 0
        %604 = vmatprep.subr.bf16.mxu0 0
        %605 = vmatpush1.bf16.xpose.msra.mxu0 0
        %606 = vmatprep.mubr.bf16.mxu0 0
        %607 = vmatmul.mubr.bf16.gmra.mrb[0].mxu0 %v522
        %v608 = vpop.f32.mrb[0].mxu0
        %v609 = vadd.f32 %v512, %v608
        %v610 = vpop.f32.mrb[0].mxu0
        %v611 = vpop.f32.mrb[0].mxu0
        %v612 = vadd.f32 %v512, %v611
        %v613 = vpop.f32.mrb[0].mxu0
        %614 = vmatprep.mubr.bf16.mxu0 0
        %615 = vmatmul.mubr.bf16.gmra.mrb[0].mxu0 %v523
        %v616 = vpop.f32.mrb[0].mxu0
        %v617 = vadd.f32 %v512, %v616
        %v618 = vpop.f32.mrb[0].mxu0
        %v619 = vpop.f32.mrb[0].mxu0
        %v620 = vadd.f32 %v512, %v619
        %v621 = vpop.f32.mrb[0].mxu0
        %622 = vdwg.mxu0
        %v623 = vpack.c.bf16 %v612, %v609
        %v624 = vpack.c.bf16 %v620, %v617
        %v625 = vtanh.bf16.pop %v623
        %v626 = vtanh.bf16.pop %v624
        %v627 = vunpack.c.l.bf16 %v625
        %v628 = vunpack.c.h.bf16 %v625
        %v629 = vunpack.c.l.bf16 %v626
        %v630 = vunpack.c.h.bf16 %v626
        %v631 = vmul.f32 %v627, %v629
        %v632 = vmul.f32 %v628, %v630
        %633 = vadd.xlane.f32.xlu0 %v631
        %v634 = vpop.xlane.xlu0 %633
        %635 = vadd.xlane.f32.xlu0 %v632
        %v636 = vpop.xlane.xlu0 %635
        %v637 = vmul.f32 %v627, %v627
        %v638 = vmul.f32 %v628, %v628
        %639 = vadd.xlane.f32.xlu0 %v637
        %v640 = vpop.xlane.xlu0 %639
        %641 = vadd.xlane.f32.xlu0 %v638
        %v642 = vpop.xlane.xlu0 %641
        %v643 = vmul.f32 %v629, %v629
        %v644 = vmul.f32 %v630, %v630
        %645 = vadd.xlane.f32.xlu0 %v643
        %v646 = vpop.xlane.xlu0 %645
        %647 = vadd.xlane.f32.xlu0 %v644
        %v648 = vpop.xlane.xlu0 %647
        %v649 = vmul.f32 %v640, %v646
        %v650 = vmul.f32 %v642, %v648
        %v651 = vmax.f32 %v649, 1e-16
        %v652 = vmax.f32 %v650, 1e-16
        %v653 = vrsqrt.pop %v651
        %v654 = vrsqrt.pop %v652
        %v655 = vmul.f32 %v634, %v653
        %v656 = vmul.f32 %v636, %v654
        %v657 = vmul.f32 %v503, %v505
        %v658 = vmul.f32 %v504, %v506
        %659 = vadd.xlane.f32.xlu0 %v657
        %v660 = vpop.xlane.xlu0 %659
        %661 = vadd.xlane.f32.xlu0 %v658
        %v662 = vpop.xlane.xlu0 %661
        %v663 = vmul.f32 %v503, %v503
        %v664 = vmul.f32 %v504, %v504
        %665 = vadd.xlane.f32.xlu0 %v663
        %v666 = vpop.xlane.xlu0 %665
        %667 = vadd.xlane.f32.xlu0 %v664
        %v668 = vpop.xlane.xlu0 %667
        %v669 = vmul.f32 %v505, %v505
        %v670 = vmul.f32 %v506, %v506
        %671 = vadd.xlane.f32.xlu0 %v669
        %v672 = vpop.xlane.xlu0 %671
        %673 = vadd.xlane.f32.xlu0 %v670
        %v674 = vpop.xlane.xlu0 %673
        %v675 = vmul.f32 %v666, %v672
        %v676 = vmul.f32 %v668, %v674
        %v677 = vmax.f32 %v675, 1e-16
        %v678 = vmax.f32 %v676, 1e-16
        %v679 = vrsqrt.pop %v677
        %v680 = vrsqrt.pop %v678
        %v681 = vmul.f32 %v660, %v679
        %v682 = vmul.f32 %v662, %v680
        %v683 = vadd.f32 %v655, %v681
        %v684 = vadd.f32 %v656, %v682
        %v685 = vmul.f32 %v683, 0.5
        %v686 = vmul.f32 %v684, 0.5
        %vm687 = vcmask 7168
        %688 = vst.msk [vmem:[%s340] sm:$0xff] %vm687, %v685
        %689 = vst.msk [vmem:[%s340 + $0x8] sm:$0xff] %vm687, %v686
        %s690 = smul.u32 2, %s24
        %p691 = scmp.lt.s32.totalorder %s690, 3
        %s692 = scalar_select %p691, %s690, 3
        %s693 = smul.addr %s692, 8
        %s694 = scalar_lea.vmem %s6, %s693
        // Predicated region
        $region61: #{tpu_custom_call.1} parent=43 // pred_check
          %p695 = pneg %p178
        $region62: #{tpu_custom_call.1} parent=43 // pred_check_branch
          %697 = sbr.rel (%p695) target = $region64
        $region63: #{tpu_custom_call.1} parent=43 // pred_region
          %s698 = smul.u32 2, %s24
        $region64: #{tpu_custom_call.1} parent=43 // pred_fallthru
          _
      $region44: #{tpu_custom_call.1} parent=5 // pred_fallthru
        _
      %p699 = scmp.le.s32.totalorder 2, %s19
      // Predicated region
      $region65: #{tpu_custom_call.1} parent=5 // pred_check
        %p700 = pneg %p699
      $region66: #{tpu_custom_call.1} parent=5 // pred_check_branch
        %702 = sbr.rel (%p700) target = $region68
      $region67: #{tpu_custom_call.1} parent=5 // pred_region
        %s703 = ssub.s32 %s19, 2
        // Predicated region
        $region69: #{tpu_custom_call.1} parent=67 // pred_check
          %p704 = pneg %p184
        $region70: #{tpu_custom_call.1} parent=67 // pred_check_branch
          %706 = sbr.rel (%p704) target = $region72
        $region71: #{tpu_custom_call.1} parent=67 // pred_region
          %s707 = smul.u32 2, %s25
          %p708 = scmp.lt.s32.totalorder %s707, 3
          %s709 = scalar_select %p708, %s707, 3
          %s710 = smul.addr %s709, 8
          %s711 = scalar_lea.vmem %s6, %s710
        $region72: #{tpu_custom_call.1} parent=67 // pred_fallthru
          _
      $region68: #{tpu_custom_call.1} parent=5 // pred_fallthru
        _
    $region6: #{tpu_custom_call.1} parent=1 // loop_footer
      %s23 = sadd.s32 1, %s19
    $region7: #{tpu_custom_call.1} parent=1 // loop_footer_branch
      %18 = sbr.rel target = $region3
    $region8: #{tpu_custom_call.1} parent=1 // loop_exit
      _
    %712 = vsyncpa [#allocation3], 1
    %s713 = scalar_lea.sflag [#allocation3], 1
    %714 = vsyncpa %s713, 1
    %715 = vsyncpa [#allocation5], 1
    %s716 = scalar_lea.sflag [#allocation5], 1
    %717 = vsyncpa %s716, 1
    %718 = vsyncpa [#allocation8], 1

// kernel: tpu_custom_call.1
$region0: #{tpu_custom_call.1}
  #allocation0 [shape = 'u32[]', space=smem, size = 0x4, offset = 0x4, fixed_abs, tag = 'smem constant byte address 0x4 - core index']
  #allocation1 [shape = 'u32[144,128]{1,0:T(1,128)}', space=vmem, size = 0x12000, scoped, tag = 'internal scratch']
  %s0 = inlined_call_operand.hbm [shape: bf16[2,32,128], index: 0, kind: input, shape index: {}]
  %s1 = inlined_call_operand.hbm [shape: bf16[2,32,128], index: 1, kind: input, shape index: {}]
  %s2 = inlined_call_operand.hbm [shape: bf16[128,128], index: 2, kind: input, shape index: {}]
  %s3 = inlined_call_operand.vmem [shape: f32[1,128], index: 3, kind: input, shape index: {}]
  %s4 = inlined_call_operand.hbm [shape: bf16[128,128], index: 4, kind: input, shape index: {}]
  %s5 = inlined_call_operand.vmem [shape: f32[1,128], index: 5, kind: input, shape index: {}]
  %s6 = inlined_call_operand.vmem [shape: f32[32,1], index: 6, kind: output, shape index: {}]
  %s7 = sld [smem:[#allocation0]]
  $region73: #{tpu_custom_call.1} parent=0
    _
  %s9 = ssub.s32 1, %s7
  %s10 = scalar_select 0, %s9, %s7
  $region1: #{tpu_custom_call.1} parent=0
    #allocation2 [shape = 'u8[16384]{0}', space=vmem, size = 0x4000, scoped, tag = 'input window, operand 0']
    #allocation3 [shape = 's32[2]{0}', space=sflag, size = 0x8, scoped, tag = 'scoped memory for tpu_custom_call.1']
    #allocation4 [shape = 'u8[16384]{0}', space=vmem, size = 0x4000, scoped, tag = 'input window, operand 1']
    #allocation5 [shape = 's32[2]{0}', space=sflag, size = 0x8, scoped, tag = 'scoped memory for tpu_custom_call.1']
    #allocation6 [shape = 'u8[32768]{0}', space=vmem, size = 0x8000, scoped, tag = 'input window, operand 2, single buffered']
    #allocation7 [shape = 'u8[32768]{0}', space=vmem, size = 0x8000, scoped, tag = 'input window, operand 4, single buffered']
    #allocation8 [shape = 's32[1]{0}', space=sflag, size = 0x4, scoped, tag = 'scoped memory for tpu_custom_call.1']
    %11 = vsyncpa [#allocation3], 0
    %s12 = scalar_lea.sflag [#allocation3], 1
    %13 = vsyncpa %s12, 0
    %14 = vsyncpa [#allocation5], 0
    %s15 = scalar_lea.sflag [#allocation5], 1
    %16 = vsyncpa %s15, 0
    %17 = vsyncpa [#allocation8], 0
    loop: start=0, step=1, limit=4
    $region2: #{tpu_custom_call.1} parent=1 // loop_pre_header
      _
    $region3: #{tpu_custom_call.1} parent=1 // loop_header
      %s19 = sphi 0, %s23
      %p20 = scmp.ge.s32.totalorder %s19, 4
      %s29 = sphi 0, %s31
      %s32 = sphi 0, %s29
      %s33 = sphi 0, %s32
      %s49 = sphi 0, %s33
      %s55 = sphi 0, %s57
      %s58 = sphi 0, %s55
      %s59 = sphi 0, %s58
      %s75 = sphi 0, %s59
      %s79 = sphi 0, %s79
      %s81 = sphi 0, %s79
      %s82 = sphi 0, %s81
      %s96 = sphi 0, %s82
      %s100 = sphi 0, %s100
      %s102 = sphi 0, %s100
      %s103 = sphi 0, %s102
      %s117 = sphi 0, %s103
      %s121 = sphi 0, %s121
      %s123 = sphi 0, %s121
      %s124 = sphi 0, %s123
      %s138 = sphi 0, %s124
      %s142 = sphi 0, %s142
      %s144 = sphi 0, %s142
      %s145 = sphi 0, %s144
      %s159 = sphi 0, %s145
      %s165 = sphi 0, %s167
      %s168 = sphi 0, %s165
      %s169 = sphi 0, %s168
      %s185 = sphi 0, %s169
    $region4: #{tpu_custom_call.1} parent=1 // loop_header_branch
      %22 = sbr.rel (%p20) target = $region8
    $region5: #{tpu_custom_call.1} parent=1 // loop_body
      %s24 = ssub.s32 %s19, 1
      %s25 = ssub.s32 %s19, 2
      %s26 = sadd.s32 %s19, 1
      %s27 = ssub.s32 %s19, %s26
      %p28 = scmp.eq.s32.totalorder %s27, 0
      %s30 = sadd.s32 %s29, 1
      %s31 = scalar_select %p28, %s29, %s30
      %p34 = pneg %p28
      %p35 = scmp.eq.s32.totalorder %s19, 1
      %p36 = por %p34, %p35
      %p37 = scmp.ne.s32.totalorder %s29, %s32
      %p38 = scmp.eq.s32.totalorder %s19, 0
      %p39 = por %p37, %p38
      %p40 = scmp.ne.s32.totalorder %s29, %s32
      %p41 = scmp.eq.s32.totalorder %s24, 1
      %p42 = por %p40, %p41
      %p43 = scmp.ne.s32.totalorder %s32, %s33
      %p44 = scmp.eq.s32.totalorder %s24, 0
      %p45 = por %p43, %p44
      %p46 = scmp.ne.s32.totalorder %s32, %s33
      %p47 = scmp.eq.s32.totalorder %s25, 1
      %p48 = por %p46, %p47
      %p50 = scmp.ne.s32.totalorder %s33, %s49
      %p51 = scmp.eq.s32.totalorder %s25, 0
      %p52 = por %p50, %p51
      %s53 = ssub.s32 %s19, %s26
      %p54 = scmp.eq.s32.totalorder %s53, 0
      %s56 = sadd.s32 %s55, 1
      %s57 = scalar_select %p54, %s55, %s56
      %p60 = pneg %p54
      %p61 = scmp.eq.s32.totalorder %s19, 1
      %p62 = por %p60, %p61
      %p63 = scmp.ne.s32.totalorder %s55, %s58
      %p64 = scmp.eq.s32.totalorder %s19, 0
      %p65 = por %p63, %p64
      %p66 = scmp.ne.s32.totalorder %s55, %s58
      %p67 = scmp.eq.s32.totalorder %s24, 1
      %p68 = por %p66, %p67
      %p69 = scmp.ne.s32.totalorder %s58, %s59
      %p70 = scmp.eq.s32.totalorder %s24, 0
      %p71 = por %p69, %p70
      %p72 = scmp.ne.s32.totalorder %s58, %s59
      %p73 = scmp.eq.s32.totalorder %s25, 1
      %p74 = por %p72, %p73
      %p76 = scmp.ne.s32.totalorder %s59, %s75
      %p77 = scmp.eq.s32.totalorder %s25, 0
      %p78 = por %p76, %p77
      %s80 = sadd.s32 %s79, 1
      %p83 = scmp.eq.s32.totalorder %s19, 1
      %p84 = scmp.ne.s32.totalorder %s79, %s81
      %p85 = scmp.eq.s32.totalorder %s19, 0
      %p86 = por %p84, %p85
      %p87 = scmp.ne.s32.totalorder %s79, %s81
      %p88 = scmp.eq.s32.totalorder %s24, 1
      %p89 = por %p87, %p88
      %p90 = scmp.ne.s32.totalorder %s81, %s82
      %p91 = scmp.eq.s32.totalorder %s24, 0
      %p92 = por %p90, %p91
      %p93 = scmp.ne.s32.totalorder %s81, %s82
      %p94 = scmp.eq.s32.totalorder %s25, 1
      %p95 = por %p93, %p94
      %p97 = scmp.ne.s32.totalorder %s82, %s96
      %p98 = scmp.eq.s32.totalorder %s25, 0
      %p99 = por %p97, %p98
      %s101 = sadd.s32 %s100, 1
      %p104 = scmp.eq.s32.totalorder %s19, 1
      %p105 = scmp.ne.s32.totalorder %s100, %s102
      %p106 = scmp.eq.s32.totalorder %s19, 0
      %p107 = por %p105, %p106
      %p108 = scmp.ne.s32.totalorder %s100, %s102
      %p109 = scmp.eq.s32.totalorder %s24, 1
      %p110 = por %p108, %p109
      %p111 = scmp.ne.s32.totalorder %s102, %s103
      %p112 = scmp.eq.s32.totalorder %s24, 0
      %p113 = por %p111, %p112
      %p114 = scmp.ne.s32.totalorder %s102, %s103
      %p115 = scmp.eq.s32.totalorder %s25, 1
      %p116 = por %p114, %p115
      %p118 = scmp.ne.s32.totalorder %s103, %s117
      %p119 = scmp.eq.s32.totalorder %s25, 0
      %p120 = por %p118, %p119
      %s122 = sadd.s32 %s121, 1
      %p125 = scmp.eq.s32.totalorder %s19, 1
      %p126 = scmp.ne.s32.totalorder %s121, %s123
      %p127 = scmp.eq.s32.totalorder %s19, 0
      %p128 = por %p126, %p127
      %p129 = scmp.ne.s32.totalorder %s121, %s123
      %p130 = scmp.eq.s32.totalorder %s24, 1
      %p131 = por %p129, %p130
      %p132 = scmp.ne.s32.totalorder %s123, %s124
      %p133 = scmp.eq.s32.totalorder %s24, 0
      %p134 = por %p132, %p133
      %p135 = scmp.ne.s32.totalorder %s123, %s124
      %p136 = scmp.eq.s32.totalorder %s25, 1
      %p137 = por %p135, %p136
      %p139 = scmp.ne.s32.totalorder %s124, %s138
      %p140 = scmp.eq.s32.totalorder %s25, 0
      %p141 = por %p139, %p140
      %s143 = sadd.s32 %s142, 1
      %p146 = scmp.eq.s32.totalorder %s19, 1
      %p147 = scmp.ne.s32.totalorder %s142, %s144
      %p148 = scmp.eq.s32.totalorder %s19, 0
      %p149 = por %p147, %p148
      %p150 = scmp.ne.s32.totalorder %s142, %s144
      %p151 = scmp.eq.s32.totalorder %s24, 1
      %p152 = por %p150, %p151
      %p153 = scmp.ne.s32.totalorder %s144, %s145
      %p154 = scmp.eq.s32.totalorder %s24, 0
      %p155 = por %p153, %p154
      %p156 = scmp.ne.s32.totalorder %s144, %s145
      %p157 = scmp.eq.s32.totalorder %s25, 1
      %p158 = por %p156, %p157
      %p160 = scmp.ne.s32.totalorder %s145, %s159
      %p161 = scmp.eq.s32.totalorder %s25, 0
      %p162 = por %p160, %p161
      %s163 = ssub.s32 %s19, %s26
      %p164 = scmp.eq.s32.totalorder %s163, 0
      %s166 = sadd.s32 %s165, 1
      %s167 = scalar_select %p164, %s165, %s166
      %p170 = pneg %p164
      %p171 = scmp.eq.s32.totalorder %s19, 1
      %p172 = por %p170, %p171
      %p173 = scmp.ne.s32.totalorder %s165, %s168
      %p174 = scmp.eq.s32.totalorder %s19, 0
      %p175 = por %p173, %p174
      %p176 = scmp.ne.s32.totalorder %s165, %s168
      %p177 = scmp.eq.s32.totalorder %s24, 1
      %p178 = por %p176, %p177
      %p179 = scmp.ne.s32.totalorder %s168, %s169
      %p180 = scmp.eq.s32.totalorder %s24, 0
      %p181 = por %p179, %p180
      %p182 = scmp.ne.s32.totalorder %s168, %s169
      %p183 = scmp.eq.s32.totalorder %s25, 1
      %p184 = por %p182, %p183
      %p186 = scmp.ne.s32.totalorder %s169, %s185
      %p187 = scmp.eq.s32.totalorder %s25, 0
      %p188 = por %p186, %p187
      %p189 = scmp.le.s32.totalorder 1, %s19
      %p190 = scmp.lt.s32.totalorder %s19, 3
      %p191 = pnand %p189, %p190
      %p192 = pneg %p191
      // Predicated region
      $region9: #{tpu_custom_call.1} parent=5 // pred_check
        _
      $region10: #{tpu_custom_call.1} parent=5 // pred_check_branch
        %194 = sbr.rel (%p191) target = $region12
      $region11: #{tpu_custom_call.1} parent=5 // pred_region
        %s195 = ssub.s32 %s19, 1
        // Predicated region
        $region13: #{tpu_custom_call.1} parent=11 // pred_check
          %p196 = pneg %p92
        $region14: #{tpu_custom_call.1} parent=11 // pred_check_branch
          %198 = sbr.rel (%p196) target = $region16
        $region15: #{tpu_custom_call.1} parent=11 // pred_region
          %s200 = ssub.s32 1024, 1024
          %201 = vsyncadd [#allocation5], %s200
          %s202 = sshll.u32 [#allocation6], 4
          %s203 = int_to_ptr.vmem [resolvable:$true] %s202
          %208 = dma.hbm_to_vmem [thread:$0]  %s2, 1024, %s203, [#allocation5], 64, 64, 4
        $region16: #{tpu_custom_call.1} parent=11 // pred_fallthru
          _
        // Predicated region
        $region17: #{tpu_custom_call.1} parent=11 // pred_check
          %p209 = pneg %p113
        $region18: #{tpu_custom_call.1} parent=11 // pred_check_branch
          %211 = sbr.rel (%p209) target = $region20
        $region19: #{tpu_custom_call.1} parent=11 // pred_region
          _
        $region20: #{tpu_custom_call.1} parent=11 // pred_fallthru
          _
        // Predicated region
        $region21: #{tpu_custom_call.1} parent=11 // pred_check
          %p212 = pneg %p134
        $region22: #{tpu_custom_call.1} parent=11 // pred_check_branch
          %214 = sbr.rel (%p212) target = $region24
        $region23: #{tpu_custom_call.1} parent=11 // pred_region
          %s216 = ssub.s32 1024, 1024
          %217 = vsyncadd [#allocation8], %s216
          %s218 = sshll.u32 [#allocation7], 4
          %s219 = int_to_ptr.vmem [resolvable:$true] %s218
          %224 = dma.hbm_to_vmem [thread:$0]  %s4, 1024, %s219, [#allocation8], 64, 64, 4
        $region24: #{tpu_custom_call.1} parent=11 // pred_fallthru
          _
        // Predicated region
        $region25: #{tpu_custom_call.1} parent=11 // pred_check
          %p225 = pneg %p155
        $region26: #{tpu_custom_call.1} parent=11 // pred_check_branch
          %227 = sbr.rel (%p225) target = $region28
        $region27: #{tpu_custom_call.1} parent=11 // pred_region
          _
        $region28: #{tpu_custom_call.1} parent=11 // pred_fallthru
          _
      $region12: #{tpu_custom_call.1} parent=5 // pred_fallthru
        _
      %p228 = scmp.lt.s32.totalorder %s19, 2
      // Predicated region
      $region29: #{tpu_custom_call.1} parent=5 // pred_check
        %p229 = pneg %p228
      $region30: #{tpu_custom_call.1} parent=5 // pred_check_branch
        %231 = sbr.rel (%p229) target = $region32
      $region31: #{tpu_custom_call.1} parent=5 // pred_region
        // Predicated region
        $region33: #{tpu_custom_call.1} parent=31 // pred_check
          %p232 = pneg %p39
        $region34: #{tpu_custom_call.1} parent=31 // pred_check_branch
          %234 = sbr.rel (%p232) target = $region36
        $region35: #{tpu_custom_call.1} parent=31 // pred_region
          %s235 = sand.u32 %s29, 1
          %s236 = scalar_lea.sflag [#allocation3], %s235
          %s237 = sand.u32 %s29, 1
          %s238 = smul.addr %s237, 16
          %s239 = scalar_lea.vmem [#allocation2], %s238
          %s241 = ssub.s32 256, 256
          %242 = vsyncadd %s236, %s241
          %s243 = smul.addr %s19, 4
          %s244 = smul.addr %s243, 64
          %s245 = scalar_lea.hbm %s0, %s244
          %s246 = sshll.u32 %s239, 4
          %s247 = int_to_ptr.vmem [resolvable:$true] %s246
          %252 = dma.hbm_to_vmem [thread:$0]  %s245, 256, %s247, %s236, 64, 64, 4
        $region36: #{tpu_custom_call.1} parent=31 // pred_fallthru
          _
        // Predicated region
        $region37: #{tpu_custom_call.1} parent=31 // pred_check
          %p253 = pneg %p65
        $region38: #{tpu_custom_call.1} parent=31 // pred_check_branch
          %255 = sbr.rel (%p253) target = $region40
        $region39: #{tpu_custom_call.1} parent=31 // pred_region
          %s256 = sand.u32 %s19, 1
          %s257 = scalar_lea.sflag [#allocation5], %s256
          %s258 = sand.u32 %s55, 1
          %s259 = smul.addr %s258, 16
          %s260 = scalar_lea.vmem [#allocation4], %s259
          %s262 = ssub.s32 256, 256
          %263 = vsyncadd %s257, %s262
          %s264 = smul.addr %s19, 4
          %s265 = smul.addr %s264, 64
          %s266 = scalar_lea.hbm %s1, %s265
          %s267 = sshll.u32 %s260, 4
          %s268 = int_to_ptr.vmem [resolvable:$true] %s267
          %273 = dma.hbm_to_vmem [thread:$0]  %s266, 256, %s268, %s257, 64, 64, 4
        $region40: #{tpu_custom_call.1} parent=31 // pred_fallthru
          _
      $region32: #{tpu_custom_call.1} parent=5 // pred_fallthru
        _
      %p274 = scmp.le.s32.totalorder 1, %s19
      %p275 = scmp.lt.s32.totalorder %s19, 3
      %p276 = pnand %p274, %p275
      %p277 = pneg %p276
      // Predicated region
      $region41: #{tpu_custom_call.1} parent=5 // pred_check
        _
      $region42: #{tpu_custom_call.1} parent=5 // pred_check_branch
        %279 = sbr.rel (%p276) target = $region44
      $region43: #{tpu_custom_call.1} parent=5 // pred_region
        %s280 = ssub.s32 %s19, 1
        %s281 = sand.u32 %s32, 1
        %s282 = scalar_lea.sflag [#allocation3], %s281
        %s283 = sand.u32 %s32, 1
        %s284 = smul.addr %s283, 16
        %s285 = scalar_lea.vmem [#allocation2], %s284
        // Predicated region
        $region45: #{tpu_custom_call.1} parent=43 // pred_check
          %p286 = pneg %p45
        $region46: #{tpu_custom_call.1} parent=43 // pred_check_branch
          %288 = sbr.rel (%p286) target = $region48
        $region47: #{tpu_custom_call.1} parent=43 // pred_region
          %289 = dma.done %s282, 256
        $region48: #{tpu_custom_call.1} parent=43 // pred_fallthru
          _
        %s290 = sand.u32 %s24, 1
        %s291 = scalar_lea.sflag [#allocation5], %s290
        %s292 = sand.u32 %s58, 1
        %s293 = smul.addr %s292, 16
        %s294 = scalar_lea.vmem [#allocation4], %s293
        // Predicated region
        $region49: #{tpu_custom_call.1} parent=43 // pred_check
          %p295 = pneg %p71
        $region50: #{tpu_custom_call.1} parent=43 // pred_check_branch
          %297 = sbr.rel (%p295) target = $region52
        $region51: #{tpu_custom_call.1} parent=43 // pred_region
          %298 = dma.done %s291, 256
        $region52: #{tpu_custom_call.1} parent=43 // pred_fallthru
          _
        // Predicated region
        $region53: #{tpu_custom_call.1} parent=43 // pred_check
          %p299 = pneg %p92
        $region54: #{tpu_custom_call.1} parent=43 // pred_check_branch
          %301 = sbr.rel (%p299) target = $region56
        $region55: #{tpu_custom_call.1} parent=43 // pred_region
          %302 = dma.done [#allocation5], 1024
        $region56: #{tpu_custom_call.1} parent=43 // pred_fallthru
          _
        // Predicated region
        $region57: #{tpu_custom_call.1} parent=43 // pred_check
          %p303 = pneg %p134
        $region58: #{tpu_custom_call.1} parent=43 // pred_check_branch
          %305 = sbr.rel (%p303) target = $region60
        $region59: #{tpu_custom_call.1} parent=43 // pred_region
          %306 = dma.done [#allocation8], 1024
        $region60: #{tpu_custom_call.1} parent=43 // pred_fallthru
          _
        %s307 = sand.u32 %s32, 1
        %s308 = scalar_lea.sflag [#allocation3], %s307
        %s309 = sand.u32 %s32, 1
        %s310 = smul.addr %s309, 16
        %s311 = scalar_lea.vmem [#allocation2], %s310
        %p312 = pneg %p45
        %p313 = pneg %p42
        %s314 = sand.u32 %s24, 1
        %s315 = scalar_lea.sflag [#allocation5], %s314
        %s316 = sand.u32 %s58, 1
        %s317 = smul.addr %s316, 16
        %s318 = scalar_lea.vmem [#allocation4], %s317
        %p319 = pneg %p71
        %p320 = pneg %p68
        %p321 = pneg %p92
        %p322 = pneg %p89
        %p323 = pneg %p113
        %p324 = pneg %p110
        %p325 = pneg %p134
        %p326 = pneg %p131
        %p327 = pneg %p155
        %p328 = pneg %p152
        %p329 = pneg %p181
        %p330 = pneg %p178
        %s331 = smul.u32 2, %s24
        %p332 = scmp.lt.s32.totalorder %s331, 3
        %s333 = scalar_select %p332, %s331, 3
        %s334 = smul.addr %s333, 8
        %s335 = scalar_lea.vmem %s6, %s334
        %s336 = smul.u32 2, %s24
        %p337 = scmp.lt.s32.totalorder %s336, 3
        %s338 = scalar_select %p337, %s336, 3
        %s339 = smul.addr %s338, 8
        %s340 = scalar_lea.vmem %s6, %s339
        %s341 = smul.u32 2, %s24
        %v343 = vld [vmem:[%s285] sm:$0xf]
        %v344 = vld [vmem:[%s285 + $0x4] sm:$0xf]
        %v345 = vld [vmem:[%s285 + $0x8] sm:$0xf]
        %v346 = vld [vmem:[%s285 + $0xc] sm:$0xf]
        %v347 = vld [vmem:[#allocation6] sm:$0xf]
        %v348 = vld [vmem:[#allocation6 + $0x4] sm:$0xf]
        %v349 = vld [vmem:[#allocation6 + $0x8] sm:$0xf]
        %v350 = vld [vmem:[#allocation6 + $0xc] sm:$0xf]
        %v351 = vld [vmem:[#allocation6 + $0x10] sm:$0xf]
        %v352 = vld [vmem:[#allocation6 + $0x14] sm:$0xf]
        %v353 = vld [vmem:[#allocation6 + $0x18] sm:$0xf]
        %v354 = vld [vmem:[#allocation6 + $0x1c] sm:$0xf]
        %v355 = vld [vmem:[#allocation6 + $0x20] sm:$0xf]
        %v356 = vld [vmem:[#allocation6 + $0x24] sm:$0xf]
        %v357 = vld [vmem:[#allocation6 + $0x28] sm:$0xf]
        %v358 = vld [vmem:[#allocation6 + $0x2c] sm:$0xf]
        %v359 = vld [vmem:[#allocation6 + $0x30] sm:$0xf]
        %v360 = vld [vmem:[#allocation6 + $0x34] sm:$0xf]
        %v361 = vld [vmem:[#allocation6 + $0x38] sm:$0xf]
        %v362 = vld [vmem:[#allocation6 + $0x3c] sm:$0xf]
        %v363 = vld [vmem:[%s294] sm:$0xf]
        %v364 = vld [vmem:[%s294 + $0x4] sm:$0xf]
        %v365 = vld [vmem:[%s294 + $0x8] sm:$0xf]
        %v366 = vld [vmem:[%s294 + $0xc] sm:$0xf]
        %v367 = vld [vmem:[#allocation7] sm:$0xf]
        %v368 = vld [vmem:[#allocation7 + $0x4] sm:$0xf]
        %v369 = vld [vmem:[#allocation7 + $0x8] sm:$0xf]
        %v370 = vld [vmem:[#allocation7 + $0xc] sm:$0xf]
        %v371 = vld [vmem:[#allocation7 + $0x10] sm:$0xf]
        %v372 = vld [vmem:[#allocation7 + $0x14] sm:$0xf]
        %v373 = vld [vmem:[#allocation7 + $0x18] sm:$0xf]
        %v374 = vld [vmem:[#allocation7 + $0x1c] sm:$0xf]
        %v375 = vld [vmem:[#allocation7 + $0x20] sm:$0xf]
        %v376 = vld [vmem:[#allocation7 + $0x24] sm:$0xf]
        %v377 = vld [vmem:[#allocation7 + $0x28] sm:$0xf]
        %v378 = vld [vmem:[#allocation7 + $0x2c] sm:$0xf]
        %v379 = vld [vmem:[#allocation7 + $0x30] sm:$0xf]
        %v380 = vld [vmem:[#allocation7 + $0x34] sm:$0xf]
        %v381 = vld [vmem:[#allocation7 + $0x38] sm:$0xf]
        %v382 = vld [vmem:[#allocation7 + $0x3c] sm:$0xf]
        %v383 = vld [vmem:[%s3] sm:$0x1]
        %v385 = vlaneseq
        %v386 = vshrl.u32 %v385, 7
        %v387 = vsub.s32 0, %v386
        %v388 = vrot.slane %v383, %v387
        %v394 = vunpack.c.l.b16 %v343
        %v395 = vunpack.c.l.b16 %v344
        %v396 = vunpack.c.l.b16 %v345
        %v397 = vunpack.c.l.b16 %v346
        %v398 = vpack.c.b16 %v395, %v394
        %v399 = vpack.c.b16 %v397, %v396
        %v418 = vunpack.c.l.b16 %v347
        %v419 = vunpack.c.l.b16 %v348
        %v420 = vunpack.c.l.b16 %v349
        %v421 = vunpack.c.l.b16 %v350
        %v422 = vunpack.c.l.b16 %v351
        %v423 = vunpack.c.l.b16 %v352
        %v424 = vunpack.c.l.b16 %v353
        %v425 = vunpack.c.l.b16 %v354
        %v426 = vunpack.c.l.b16 %v355
        %v427 = vunpack.c.l.b16 %v356
        %v428 = vunpack.c.l.b16 %v357
        %v429 = vunpack.c.l.b16 %v358
        %v430 = vunpack.c.l.b16 %v359
        %v431 = vunpack.c.l.b16 %v360
        %v432 = vunpack.c.l.b16 %v361
        %v433 = vunpack.c.l.b16 %v362
        %v434 = vpack.c.b16 %v419, %v418
        %v435 = vpack.c.b16 %v421, %v420
        %v436 = vpack.c.b16 %v423, %v422
        %v437 = vpack.c.b16 %v425, %v424
        %v438 = vpack.c.b16 %v427, %v426
        %v439 = vpack.c.b16 %v429, %v428
        %v440 = vpack.c.b16 %v431, %v430
        %v441 = vpack.c.b16 %v433, %v432
        %450 = vmatprep.subr.bf16.mxu0 0
        %451 = vmatpush1.bf16.xpose.msra.mxu0 %v434
        %452 = vmatprep.subr.bf16.mxu0 0
        %453 = vmatpush1.bf16.xpose.msra.mxu0 %v435
        %454 = vmatprep.subr.bf16.mxu0 0
        %455 = vmatpush1.bf16.xpose.msra.mxu0 %v436
        %456 = vmatprep.subr.bf16.mxu0 0
        %457 = vmatpush1.bf16.xpose.msra.mxu0 %v437
        %458 = vmatprep.subr.bf16.mxu0 0
        %459 = vmatpush1.bf16.xpose.msra.mxu0 %v438
        %460 = vmatprep.subr.bf16.mxu0 0
        %461 = vmatpush1.bf16.xpose.msra.mxu0 %v439
        %462 = vmatprep.subr.bf16.mxu0 0
        %463 = vmatpush1.bf16.xpose.msra.mxu0 %v440
        %464 = vmatprep.subr.bf16.mxu0 0
        %465 = vmatpush1.bf16.xpose.msra.mxu0 %v441
        %466 = vmatprep.subr.bf16.mxu0 0
        %467 = vmatpush1.bf16.xpose.msra.mxu0 0
        %468 = vmatprep.subr.bf16.mxu0 0
        %469 = vmatpush1.bf16.xpose.msra.mxu0 0
        %470 = vmatprep.subr.bf16.mxu0 0
        %471 = vmatpush1.bf16.xpose.msra.mxu0 0
        %472 = vmatprep.subr.bf16.mxu0 0
        %473 = vmatpush1.bf16.xpose.msra.mxu0 0
        %474 = vmatprep.subr.bf16.mxu0 0
        %475 = vmatpush1.bf16.xpose.msra.mxu0 0
        %476 = vmatprep.subr.bf16.mxu0 0
        %477 = vmatpush1.bf16.xpose.msra.mxu0 0
        %478 = vmatprep.subr.bf16.mxu0 0
        %479 = vmatpush1.bf16.xpose.msra.mxu0 0
        %480 = vmatprep.subr.bf16.mxu0 0
        %481 = vmatpush1.bf16.xpose.msra.mxu0 0
        %482 = vmatprep.mubr.bf16.mxu0 0
        %483 = vmatmul.mubr.bf16.gmra.mrb[0].mxu0 %v398
        %v484 = vpop.f32.mrb[0].mxu0
        %v485 = vadd.f32 %v388, %v484
        %v486 = vpop.f32.mrb[0].mxu0
        %v487 = vpop.f32.mrb[0].mxu0
        %v488 = vadd.f32 %v388, %v487
        %v489 = vpop.f32.mrb[0].mxu0
        %490 = vmatprep.mubr.bf16.mxu0 0
        %491 = vmatmul.mubr.bf16.gmra.mrb[0].mxu0 %v399
        %v492 = vpop.f32.mrb[0].mxu0
        %v493 = vadd.f32 %v388, %v492
        %v494 = vpop.f32.mrb[0].mxu0
        %v495 = vpop.f32.mrb[0].mxu0
        %v496 = vadd.f32 %v388, %v495
        %v497 = vpop.f32.mrb[0].mxu0
        %498 = vdwg.mxu0
        %v499 = vpack.c.bf16 %v488, %v485
        %v500 = vpack.c.bf16 %v496, %v493
        %v501 = vtanh.bf16.pop %v499
        %v502 = vtanh.bf16.pop %v500
        %v503 = vunpack.c.l.bf16 %v501
        %v504 = vunpack.c.h.bf16 %v501
        %v505 = vunpack.c.l.bf16 %v502
        %v506 = vunpack.c.h.bf16 %v502
        %v507 = vld [vmem:[%s5] sm:$0x1]
        %v509 = vlaneseq
        %v510 = vshrl.u32 %v509, 7
        %v511 = vsub.s32 0, %v510
        %v512 = vrot.slane %v507, %v511
        %v518 = vunpack.c.l.b16 %v363
        %v519 = vunpack.c.l.b16 %v364
        %v520 = vunpack.c.l.b16 %v365
        %v521 = vunpack.c.l.b16 %v366
        %v522 = vpack.c.b16 %v519, %v518
        %v523 = vpack.c.b16 %v521, %v520
        %v542 = vunpack.c.l.b16 %v367
        %v543 = vunpack.c.l.b16 %v368
        %v544 = vunpack.c.l.b16 %v369
        %v545 = vunpack.c.l.b16 %v370
        %v546 = vunpack.c.l.b16 %v371
        %v547 = vunpack.c.l.b16 %v372
        %v548 = vunpack.c.l.b16 %v373
        %v549 = vunpack.c.l.b16 %v374
        %v550 = vunpack.c.l.b16 %v375
        %v551 = vunpack.c.l.b16 %v376
        %v552 = vunpack.c.l.b16 %v377
        %v553 = vunpack.c.l.b16 %v378
        %v554 = vunpack.c.l.b16 %v379
        %v555 = vunpack.c.l.b16 %v380
        %v556 = vunpack.c.l.b16 %v381
        %v557 = vunpack.c.l.b16 %v382
        %v558 = vpack.c.b16 %v543, %v542
        %v559 = vpack.c.b16 %v545, %v544
        %v560 = vpack.c.b16 %v547, %v546
        %v561 = vpack.c.b16 %v549, %v548
        %v562 = vpack.c.b16 %v551, %v550
        %v563 = vpack.c.b16 %v553, %v552
        %v564 = vpack.c.b16 %v555, %v554
        %v565 = vpack.c.b16 %v557, %v556
        %574 = vmatprep.subr.bf16.mxu0 0
        %575 = vmatpush1.bf16.xpose.msra.mxu0 %v558
        %576 = vmatprep.subr.bf16.mxu0 0
        %577 = vmatpush1.bf16.xpose.msra.mxu0 %v559
        %578 = vmatprep.subr.bf16.mxu0 0
        %579 = vmatpush1.bf16.xpose.msra.mxu0 %v560
        %580 = vmatprep.subr.bf16.mxu0 0
        %581 = vmatpush1.bf16.xpose.msra.mxu0 %v561
        %582 = vmatprep.subr.bf16.mxu0 0
        %583 = vmatpush1.bf16.xpose.msra.mxu0 %v562
        %584 = vmatprep.subr.bf16.mxu0 0
        %585 = vmatpush1.bf16.xpose.msra.mxu0 %v563
        %586 = vmatprep.subr.bf16.mxu0 0
        %587 = vmatpush1.bf16.xpose.msra.mxu0 %v564
        %588 = vmatprep.subr.bf16.mxu0 0
        %589 = vmatpush1.bf16.xpose.msra.mxu0 %v565
        %590 = vmatprep.subr.bf16.mxu0 0
        %591 = vmatpush1.bf16.xpose.msra.mxu0 0
        %592 = vmatprep.subr.bf16.mxu0 0
        %593 = vmatpush1.bf16.xpose.msra.mxu0 0
        %594 = vmatprep.subr.bf16.mxu0 0
        %595 = vmatpush1.bf16.xpose.msra.mxu0 0
        %596 = vmatprep.subr.bf16.mxu0 0
        %597 = vmatpush1.bf16.xpose.msra.mxu0 0
        %598 = vmatprep.subr.bf16.mxu0 0
        %599 = vmatpush1.bf16.xpose.msra.mxu0 0
        %600 = vmatprep.subr.bf16.mxu0 0
        %601 = vmatpush1.bf16.xpose.msra.mxu0 0
        %602 = vmatprep.subr.bf16.mxu0 0
        %603 = vmatpush1.bf16.xpose.msra.mxu0 0
        %604 = vmatprep.subr.bf16.mxu0 0
        %605 = vmatpush1.bf16.xpose.msra.mxu0 0
        %606 = vmatprep.mubr.bf16.mxu0 0
        %607 = vmatmul.mubr.bf16.gmra.mrb[0].mxu0 %v522
        %v608 = vpop.f32.mrb[0].mxu0
        %v609 = vadd.f32 %v512, %v608
        %v610 = vpop.f32.mrb[0].mxu0
        %v611 = vpop.f32.mrb[0].mxu0
        %v612 = vadd.f32 %v512, %v611
        %v613 = vpop.f32.mrb[0].mxu0
        %614 = vmatprep.mubr.bf16.mxu0 0
        %615 = vmatmul.mubr.bf16.gmra.mrb[0].mxu0 %v523
        %v616 = vpop.f32.mrb[0].mxu0
        %v617 = vadd.f32 %v512, %v616
        %v618 = vpop.f32.mrb[0].mxu0
        %v619 = vpop.f32.mrb[0].mxu0
        %v620 = vadd.f32 %v512, %v619
        %v621 = vpop.f32.mrb[0].mxu0
        %622 = vdwg.mxu0
        %v623 = vpack.c.bf16 %v612, %v609
        %v624 = vpack.c.bf16 %v620, %v617
        %v625 = vtanh.bf16.pop %v623
        %v626 = vtanh.bf16.pop %v624
        %v627 = vunpack.c.l.bf16 %v625
        %v628 = vunpack.c.h.bf16 %v625
        %v629 = vunpack.c.l.bf16 %v626
        %v630 = vunpack.c.h.bf16 %v626
        %v631 = vmul.f32 %v627, %v629
        %v632 = vmul.f32 %v628, %v630
        %633 = vadd.xlane.f32.xlu0 %v631
        %v634 = vpop.xlane.xlu0 %633
        %635 = vadd.xlane.f32.xlu0 %v632
        %v636 = vpop.xlane.xlu0 %635
        %v637 = vmul.f32 %v627, %v627
        %v638 = vmul.f32 %v628, %v628
        %639 = vadd.xlane.f32.xlu0 %v637
        %v640 = vpop.xlane.xlu0 %639
        %641 = vadd.xlane.f32.xlu0 %v638
        %v642 = vpop.xlane.xlu0 %641
        %v643 = vmul.f32 %v629, %v629
        %v644 = vmul.f32 %v630, %v630
        %645 = vadd.xlane.f32.xlu0 %v643
        %v646 = vpop.xlane.xlu0 %645
        %647 = vadd.xlane.f32.xlu0 %v644
        %v648 = vpop.xlane.xlu0 %647
        %v649 = vmul.f32 %v640, %v646
        %v650 = vmul.f32 %v642, %v648
        %v651 = vmax.f32 %v649, 1e-16
        %v652 = vmax.f32 %v650, 1e-16
        %v653 = vrsqrt.pop %v651
        %v654 = vrsqrt.pop %v652
        %v655 = vmul.f32 %v634, %v653
        %v656 = vmul.f32 %v636, %v654
        %v657 = vmul.f32 %v503, %v505
        %v658 = vmul.f32 %v504, %v506
        %659 = vadd.xlane.f32.xlu0 %v657
        %v660 = vpop.xlane.xlu0 %659
        %661 = vadd.xlane.f32.xlu0 %v658
        %v662 = vpop.xlane.xlu0 %661
        %v663 = vmul.f32 %v503, %v503
        %v664 = vmul.f32 %v504, %v504
        %665 = vadd.xlane.f32.xlu0 %v663
        %v666 = vpop.xlane.xlu0 %665
        %667 = vadd.xlane.f32.xlu0 %v664
        %v668 = vpop.xlane.xlu0 %667
        %v669 = vmul.f32 %v505, %v505
        %v670 = vmul.f32 %v506, %v506
        %671 = vadd.xlane.f32.xlu0 %v669
        %v672 = vpop.xlane.xlu0 %671
        %673 = vadd.xlane.f32.xlu0 %v670
        %v674 = vpop.xlane.xlu0 %673
        %v675 = vmul.f32 %v666, %v672
        %v676 = vmul.f32 %v668, %v674
        %v677 = vmax.f32 %v675, 1e-16
        %v678 = vmax.f32 %v676, 1e-16
        %v679 = vrsqrt.pop %v677
        %v680 = vrsqrt.pop %v678
        %v681 = vmul.f32 %v660, %v679
        %v682 = vmul.f32 %v662, %v680
        %v683 = vadd.f32 %v655, %v681
        %v684 = vadd.f32 %v656, %v682
        %v685 = vmul.f32 %v683, 0.5
        %v686 = vmul.f32 %v684, 0.5
        %vm687 = vcmask 7168
        %688 = vst.msk [vmem:[%s340] sm:$0xff] %vm687, %v685
        %689 = vst.msk [vmem:[%s340 + $0x8] sm:$0xff] %vm687, %v686
        %s690 = smul.u32 2, %s24
        %p691 = scmp.lt.s32.totalorder %s690, 3
        %s692 = scalar_select %p691, %s690, 3
        %s693 = smul.addr %s692, 8
        %s694 = scalar_lea.vmem %s6, %s693
        // Predicated region
        $region61: #{tpu_custom_call.1} parent=43 // pred_check
          %p695 = pneg %p178
        $region62: #{tpu_custom_call.1} parent=43 // pred_check_branch
          %697 = sbr.rel (%p695) target = $region64
        $region63: #{tpu_custom_call.1} parent=43 // pred_region
          %s698 = smul.u32 2, %s24
        $region64: #{tpu_custom_call.1} parent=43 // pred_fallthru
          _
      $region44: #{tpu_custom_call.1} parent=5 // pred_fallthru
        _
      %p699 = scmp.le.s32.totalorder 2, %s19
      // Predicated region
      $region65: #{tpu_custom_call.1} parent=5 // pred_check
        %p700 = pneg %p699
      $region66: #{tpu_custom_call.1} parent=5 // pred_check_branch
        %702 = sbr.rel (%p700) target = $region68
      $region67: #{tpu_custom_call.1} parent=5 // pred_region
        %s703 = ssub.s32 %s19, 2
        // Predicated region
        $region69: #{tpu_custom_call.1} parent=67 // pred_check
          %p704 = pneg %p184
        $region70: #{tpu_custom_call.1} parent=67 // pred_check_branch
          %706 = sbr.rel (%p704) target = $region72
        $region71: #{tpu_custom_call.1} parent=67 // pred_region
          %s707 = smul.u32 2, %s25
          %p708 = scmp.lt.s32.totalorder %s707, 3
          %s709 = scalar_select %p708, %s707, 3
          %s710 = smul.addr %s709, 8
          %s711 = scalar_lea.vmem %s6, %s710
        $region72: #{tpu_custom_call.1} parent=67 // pred_fallthru
          _
      $region68: #{tpu_custom_call.1} parent=5 // pred_fallthru
        _
    $region6: #{tpu_custom_call.1} parent=1 // loop_footer
      %s23 = sadd.s32 1, %s19
    $region7: #{tpu_custom_call.1} parent=1 // loop_footer_branch
      %18 = sbr.rel target = $region3
    $region8: #{tpu_custom_call.1} parent=1 // loop_exit
      _
    %712 = vsyncpa [#allocation3], 1
    %s713 = scalar_lea.sflag [#allocation3], 1
    %714 = vsyncpa %s713, 1
    %715 = vsyncpa [#allocation5], 1
    %s716 = scalar_lea.sflag [#allocation5], 1
    %717 = vsyncpa %s716, 1
    %718 = vsyncpa [#allocation8], 1

</llo_original>
